<compile_context>
chip_gen: v7x
topology: tpu7x:2x2x1
jax: 0.10.0
libtpu: 0.0.40
codegen_flags: <defaults>
</compile_context>

<pallas_src>
import functools

import jax
import jax.numpy as jnp
from jax.experimental import pallas as pl
from jax.experimental.pallas import tpu as pltpu

INPUT_SIZE = 28
HIDDEN_SIZE = 64
NUM_CLASSES = 10
OUT_PAD = 128          # lane-dense padded width for the head output
SUBLANE = 8            # f32 sublane multiple


def _lstm_kernel(x_ref, wih_ref, whh_ref, b_ref, wout_ref, bout_ref,
                 out_ref, xp_ref, *, seq_len, batch, hidden):
    in_dim = x_ref.shape[-1]

    # ---- Batched input projection for all T steps in one MXU call. ----
    # x_ref is (T, B_pad, IN); collapsing the two leading (sublane-side) dims
    # is layout-free.  Bias (b_ih + b_hh) is added once here.
    x_flat = x_ref[...].reshape(seq_len * batch, in_dim)           # (T*B, IN)
    xp_ref[...] = (
        jnp.dot(x_flat, wih_ref[...], preferred_element_type=jnp.float32)
        + b_ref[...]                                               # (1, 4H) bcast
    )

    whh = whh_ref[...]                                             # hoisted load

    def step(t, carry):
        h, c = carry
        row = pl.multiple_of(t * batch, batch)                     # sublane aligned
        xp = xp_ref[pl.ds(row, batch), :]                          # (B, 4H)

        # gates = x_t@W_ih^T + b  (precomputed)  +  h_prev@W_hh^T
        gates = xp + jnp.dot(h, whh, preferred_element_type=jnp.float32)

        # Full-width EUP passes, then static 64-lane slices of the results.
        sig = jax.nn.sigmoid(gates)
        th = jnp.tanh(gates)
        i_g = sig[:, 0 * hidden:1 * hidden]
        f_g = sig[:, 1 * hidden:2 * hidden]
        g_g = th[:, 2 * hidden:3 * hidden]
        o_g = sig[:, 3 * hidden:4 * hidden]

        c_new = f_g * c + i_g * g_g
        h_new = o_g * jnp.tanh(c_new)
        return h_new, c_new

    h0 = jnp.zeros((batch, hidden), jnp.float32)
    c0 = jnp.zeros((batch, hidden), jnp.float32)
    h_T, _ = jax.lax.fori_loop(0, seq_len, step, (h0, c0), unroll=True)

    # Linear head on the final hidden state; lane-dense (B_pad, 128) store.
    out_ref[...] = (
        jnp.dot(h_T, wout_ref[...], preferred_element_type=jnp.float32)
        + bout_ref[...]
    )


def rnn_forward(x, params):
    """x: (B, T, INPUT_SIZE) float32 -> (B, NUM_CLASSES) float32."""
    w_ih, w_hh, b_ih, b_hh, w_out, b_out = (
        params["w_ih"], params["w_hh"], params["b_ih"], params["b_hh"],
        params["w_out"], params["b_out"],
    )
    B, T, IN = x.shape
    H = w_hh.shape[1]
    assert IN == INPUT_SIZE and H == HIDDEN_SIZE

    Bp = ((B + SUBLANE - 1) // SUBLANE) * SUBLANE                  # pad batch to 8

    # Time-major, batch-padded input: (T, Bp, IN).  Padded rows are zeros
    # (finite, harmless; sliced away at the end).
    x_tm = jnp.transpose(x, (1, 0, 2)).astype(jnp.float32)
    x_tm = jnp.pad(x_tm, ((0, 0), (0, Bp - B), (0, 0)))

    wih_t = jnp.transpose(w_ih).astype(jnp.float32)                # (IN, 4H)
    whh_t = jnp.transpose(w_hh).astype(jnp.float32)                # (H, 4H)
    b = (b_ih + b_hh).astype(jnp.float32).reshape(1, 4 * H)        # (1, 4H)

    # Lane-dense padded head weights: (H, 128) / (1, 128), zeros past col 10.
    wout_t = jnp.transpose(w_out).astype(jnp.float32)              # (H, 10)
    wout_p = jnp.pad(wout_t, ((0, 0), (0, OUT_PAD - NUM_CLASSES)))
    bout_p = jnp.pad(b_out.astype(jnp.float32).reshape(1, NUM_CLASSES),
                     ((0, 0), (0, OUT_PAD - NUM_CLASSES)))

    kernel = functools.partial(_lstm_kernel, seq_len=T, batch=Bp, hidden=H)

    out_p = pl.pallas_call(
        kernel,
        out_shape=jax.ShapeDtypeStruct((Bp, OUT_PAD), jnp.float32),
        grid_spec=pltpu.PrefetchScalarGridSpec(
            num_scalar_prefetch=0,
            grid=(1,),                                   # single step; time loop is in-kernel
            in_specs=[
                pl.BlockSpec((T, Bp, IN), lambda i: (0, 0, 0)),      # full sequence
                pl.BlockSpec((IN, 4 * H), lambda i: (0, 0)),         # W_ih^T
                pl.BlockSpec((H, 4 * H), lambda i: (0, 0)),          # W_hh^T
                pl.BlockSpec((1, 4 * H), lambda i: (0, 0)),          # b_ih + b_hh
                pl.BlockSpec((H, OUT_PAD), lambda i: (0, 0)),        # W_out^T (padded)
                pl.BlockSpec((1, OUT_PAD), lambda i: (0, 0)),        # b_out (padded)
            ],
            out_specs=pl.BlockSpec((Bp, OUT_PAD), lambda i: (0, 0)),
            scratch_shapes=[
                pltpu.VMEM((T * Bp, 4 * H), jnp.float32),            # x @ W_ih^T + b
            ],
        ),
        compiler_params=pltpu.CompilerParams(
            dimension_semantics=("arbitrary",),
        ),
    )(x_tm, wih_t, whh_t, b, wout_p, bout_p)

    return out_p[:B, :NUM_CLASSES]


def init_params(key):
    """Deterministic init mimicking PyTorch's uniform(-1/sqrt(H), 1/sqrt(H))."""
    H, IN = HIDDEN_SIZE, INPUT_SIZE
    k = 1.0 / jnp.sqrt(jnp.float32(H))
    keys = jax.random.split(key, 6)
    u = lambda kk, shape: jax.random.uniform(kk, shape, jnp.float32, -k, k)
    return {
        "w_ih": u(keys[0], (4 * H, IN)),       # rows ordered [i, f, g, o]
        "w_hh": u(keys[1], (4 * H, H)),
        "b_ih": u(keys[2], (4 * H,)),
        "b_hh": u(keys[3], (4 * H,)),
        "w_out": u(keys[4], (NUM_CLASSES, H)),
        "b_out": u(keys[5], (NUM_CLASSES,)),
    }


def _reference_forward(x, params):
    """Pure-JAX reference of the same LSTM + Linear for a sanity check."""
    H = HIDDEN_SIZE
    w_ih, w_hh = params["w_ih"], params["w_hh"]
    b = params["b_ih"] + params["b_hh"]
    B, T, _ = x.shape
    h = jnp.zeros((B, H), jnp.float32)
    c = jnp.zeros((B, H), jnp.float32)

    def step(carry, x_t):
        h, c = carry
        g = x_t @ w_ih.T + h @ w_hh.T + b
        i = jax.nn.sigmoid(g[:, 0 * H:1 * H])
        f = jax.nn.sigmoid(g[:, 1 * H:2 * H])
        gg = jnp.tanh(g[:, 2 * H:3 * H])
        o = jax.nn.sigmoid(g[:, 3 * H:4 * H])
        c = f * c + i * gg
        h = o * jnp.tanh(c)
        return (h, c), None

    (h, _), _ = jax.lax.scan(step, (h, c), jnp.transpose(x, (1, 0, 2)))
    return h @ params["w_out"].T + params["b_out"]


if __name__ == "__main__":
    key = jax.random.PRNGKey(0)
    pkey, xkey = jax.random.split(key)
    params = init_params(pkey)

    B, T = 2, 8
    x = jax.random.normal(xkey, (B, T, INPUT_SIZE), jnp.float32)

    out = rnn_forward(x, params)
    out = jax.block_until_ready(out)
    assert out.shape == (B, NUM_CLASSES)

    ref = jax.block_until_ready(_reference_forward(x, params))
    assert jnp.allclose(out, ref, atol=1e-4, rtol=1e-4)

    print("KERNEL_OK")
</pallas_src>

<mosaic_0001>
module attributes {stable_mosaic.version = 11 : i64} {
  func.func @_lstm_kernel(%arg0: i32, %arg1: memref<8x8x28xf32, #tpu.memory_space<vmem>>, %arg2: memref<28x256xf32, #tpu.memory_space<vmem>>, %arg3: memref<64x256xf32, #tpu.memory_space<vmem>>, %arg4: memref<1x256xf32, #tpu.memory_space<vmem>>, %arg5: memref<64x128xf32, #tpu.memory_space<vmem>>, %arg6: memref<1x128xf32, #tpu.memory_space<vmem>>, %arg7: memref<8x128xf32, #tpu.memory_space<vmem>>, %arg8: memref<64x256xf32, #tpu.memory_space<vmem>>) attributes {dimension_semantics = [#tpu.dimension_semantics<arbitrary>], iteration_bounds = array<i64: 1>, scalar_prefetch = 0 : i64, scratch_operands = 1 : i64, tpu.core_type = #tpu.core_type<tc>, window_params = [{pipeline_mode = #tpu.pipeline_mode<synchronous>, transform_indices = @transform_0, window_bounds = array<i64: 8, 8, 28>}, {pipeline_mode = #tpu.pipeline_mode<synchronous>, transform_indices = @transform_1, window_bounds = array<i64: 28, 256>}, {pipeline_mode = #tpu.pipeline_mode<synchronous>, transform_indices = @transform_2, window_bounds = array<i64: 64, 256>}, {pipeline_mode = #tpu.pipeline_mode<synchronous>, transform_indices = @transform_3, window_bounds = array<i64: 1, 256>}, {pipeline_mode = #tpu.pipeline_mode<synchronous>, transform_indices = @transform_4, window_bounds = array<i64: 64, 128>}, {pipeline_mode = #tpu.pipeline_mode<synchronous>, transform_indices = @transform_5, window_bounds = array<i64: 1, 128>}, {pipeline_mode = #tpu.pipeline_mode<synchronous>, transform_indices = @transform_6, window_bounds = array<i64: 8, 128>}]} {
    %c0 = arith.constant 0 : index
    %c0_0 = arith.constant 0 : index
    %c0_1 = arith.constant 0 : index
    %0 = vector.load %arg1[%c0, %c0_0, %c0_1] : memref<8x8x28xf32, #tpu.memory_space<vmem>>, vector<8x8x28xf32>
    %1 = vector.shape_cast %0 : vector<8x8x28xf32> to vector<64x28xf32>
    %c0_2 = arith.constant 0 : index
    %c0_3 = arith.constant 0 : index
    %2 = vector.load %arg2[%c0_2, %c0_3] : memref<28x256xf32, #tpu.memory_space<vmem>>, vector<28x256xf32>
    %cst = arith.constant dense<0.000000e+00> : vector<64x256xf32>
    %3 = tpu.matmul %1, %2, %cst {dimension_numbers = #tpu.dot_dimension_numbers<[1], [0], [0], [1], [0, 0, 1, 1], [], []>} : vector<64x28xf32>, vector<28x256xf32>, vector<64x256xf32> -> vector<64x256xf32>
    %c0_4 = arith.constant 0 : index
    %c0_5 = arith.constant 0 : index
    %4 = vector.load %arg4[%c0_4, %c0_5] : memref<1x256xf32, #tpu.memory_space<vmem>>, vector<1x256xf32>
    %5 = vector.broadcast %4 : vector<1x256xf32> to vector<64x256xf32>
    %6 = arith.addf %3, %5 : vector<64x256xf32>
    %c0_6 = arith.constant 0 : index
    %c0_7 = arith.constant 0 : index
    %7 = vector.load %arg8[%c0_6, %c0_7] : memref<64x256xf32, #tpu.memory_space<vmem>>, vector<64x256xf32>
    tpu.vector_store %arg8[%c0_6, %c0_7], %6 {strides = array<i32>} : memref<64x256xf32, #tpu.memory_space<vmem>>, vector<64x256xf32>,
    %c0_8 = arith.constant 0 : index
    %c0_9 = arith.constant 0 : index
    %8 = vector.load %arg3[%c0_8, %c0_9] : memref<64x256xf32, #tpu.memory_space<vmem>>, vector<64x256xf32>
    %cst_10 = arith.constant 0.000000e+00 : f32
    %9 = vector.broadcast %cst_10 : f32 to vector<8x64xf32>
    %cst_11 = arith.constant 0.000000e+00 : f32
    %10 = vector.broadcast %cst_11 : f32 to vector<8x64xf32>
    %c0_i32 = arith.constant 0 : i32
    %c8_i32 = arith.constant 8 : i32
    %11 = arith.muli %c0_i32, %c8_i32 : i32
    %12 = tpu.assume_multiple %11, 8 : i32
    %13 = arith.index_cast %12 : i32 to index
    %c0_12 = arith.constant 0 : index
    %14 = vector.load %arg8[%13, %c0_12] : memref<64x256xf32, #tpu.memory_space<vmem>>, vector<8x256xf32>
    %cst_13 = arith.constant dense<0.000000e+00> : vector<8x256xf32>
    %15 = tpu.matmul %9, %8, %cst_13 {dimension_numbers = #tpu.dot_dimension_numbers<[1], [0], [0], [1], [0, 0, 1, 1], [], []>} : vector<8x64xf32>, vector<64x256xf32>, vector<8x256xf32> -> vector<8x256xf32>
    %16 = arith.addf %14, %15 : vector<8x256xf32>
    %17 = arith.negf %16 : vector<8x256xf32>
    %18 = math.exp %17 : vector<8x256xf32>
    %cst_14 = arith.constant 1.000000e+00 : f32
    %19 = vector.broadcast %cst_14 : f32 to vector<8x256xf32>
    %20 = arith.addf %19, %18 : vector<8x256xf32>
    %21 = arith.divf %19, %20 : vector<8x256xf32>
    %22 = math.tanh %16 : vector<8x256xf32>
    %23 = vector.extract_strided_slice %21 {offsets = [0, 0], sizes = [8, 64], strides = [1, 1]} : vector<8x256xf32> to vector<8x64xf32>
    %24 = vector.extract_strided_slice %21 {offsets = [0, 64], sizes = [8, 64], strides = [1, 1]} : vector<8x256xf32> to vector<8x64xf32>
    %25 = vector.extract_strided_slice %22 {offsets = [0, 128], sizes = [8, 64], strides = [1, 1]} : vector<8x256xf32> to vector<8x64xf32>
    %26 = vector.extract_strided_slice %21 {offsets = [0, 192], sizes = [8, 64], strides = [1, 1]} : vector<8x256xf32> to vector<8x64xf32>
    %27 = arith.mulf %24, %10 : vector<8x64xf32>
    %28 = arith.mulf %23, %25 : vector<8x64xf32>
    %29 = arith.addf %27, %28 : vector<8x64xf32>
    %30 = math.tanh %29 : vector<8x64xf32>
    %31 = arith.mulf %26, %30 : vector<8x64xf32>
    %c1_i32 = arith.constant 1 : i32
    %c8_i32_15 = arith.constant 8 : i32
    %32 = arith.muli %c1_i32, %c8_i32_15 : i32
    %33 = tpu.assume_multiple %32, 8 : i32
    %34 = arith.index_cast %33 : i32 to index
    %c0_16 = arith.constant 0 : index
    %35 = vector.load %arg8[%34, %c0_16] : memref<64x256xf32, #tpu.memory_space<vmem>>, vector<8x256xf32>
    %cst_17 = arith.constant dense<0.000000e+00> : vector<8x256xf32>
    %36 = tpu.matmul %31, %8, %cst_17 {dimension_numbers = #tpu.dot_dimension_numbers<[1], [0], [0], [1], [0, 0, 1, 1], [], []>} : vector<8x64xf32>, vector<64x256xf32>, vector<8x256xf32> -> vector<8x256xf32>
    %37 = arith.addf %35, %36 : vector<8x256xf32>
    %38 = arith.negf %37 : vector<8x256xf32>
    %39 = math.exp %38 : vector<8x256xf32>
    %cst_18 = arith.constant 1.000000e+00 : f32
    %40 = vector.broadcast %cst_18 : f32 to vector<8x256xf32>
    %41 = arith.addf %40, %39 : vector<8x256xf32>
    %42 = arith.divf %40, %41 : vector<8x256xf32>
    %43 = math.tanh %37 : vector<8x256xf32>
    %44 = vector.extract_strided_slice %42 {offsets = [0, 0], sizes = [8, 64], strides = [1, 1]} : vector<8x256xf32> to vector<8x64xf32>
    %45 = vector.extract_strided_slice %42 {offsets = [0, 64], sizes = [8, 64], strides = [1, 1]} : vector<8x256xf32> to vector<8x64xf32>
    %46 = vector.extract_strided_slice %43 {offsets = [0, 128], sizes = [8, 64], strides = [1, 1]} : vector<8x256xf32> to vector<8x64xf32>
    %47 = vector.extract_strided_slice %42 {offsets = [0, 192], sizes = [8, 64], strides = [1, 1]} : vector<8x256xf32> to vector<8x64xf32>
    %48 = arith.mulf %45, %29 : vector<8x64xf32>
    %49 = arith.mulf %44, %46 : vector<8x64xf32>
    %50 = arith.addf %48, %49 : vector<8x64xf32>
    %51 = math.tanh %50 : vector<8x64xf32>
    %52 = arith.mulf %47, %51 : vector<8x64xf32>
    %c2_i32 = arith.constant 2 : i32
    %c8_i32_19 = arith.constant 8 : i32
    %53 = arith.muli %c2_i32, %c8_i32_19 : i32
    %54 = tpu.assume_multiple %53, 8 : i32
    %55 = arith.index_cast %54 : i32 to index
    %c0_20 = arith.constant 0 : index
    %56 = vector.load %arg8[%55, %c0_20] : memref<64x256xf32, #tpu.memory_space<vmem>>, vector<8x256xf32>
    %cst_21 = arith.constant dense<0.000000e+00> : vector<8x256xf32>
    %57 = tpu.matmul %52, %8, %cst_21 {dimension_numbers = #tpu.dot_dimension_numbers<[1], [0], [0], [1], [0, 0, 1, 1], [], []>} : vector<8x64xf32>, vector<64x256xf32>, vector<8x256xf32> -> vector<8x256xf32>
    %58 = arith.addf %56, %57 : vector<8x256xf32>
    %59 = arith.negf %58 : vector<8x256xf32>
    %60 = math.exp %59 : vector<8x256xf32>
    %cst_22 = arith.constant 1.000000e+00 : f32
    %61 = vector.broadcast %cst_22 : f32 to vector<8x256xf32>
    %62 = arith.addf %61, %60 : vector<8x256xf32>
    %63 = arith.divf %61, %62 : vector<8x256xf32>
    %64 = math.tanh %58 : vector<8x256xf32>
    %65 = vector.extract_strided_slice %63 {offsets = [0, 0], sizes = [8, 64], strides = [1, 1]} : vector<8x256xf32> to vector<8x64xf32>
    %66 = vector.extract_strided_slice %63 {offsets = [0, 64], sizes = [8, 64], strides = [1, 1]} : vector<8x256xf32> to vector<8x64xf32>
    %67 = vector.extract_strided_slice %64 {offsets = [0, 128], sizes = [8, 64], strides = [1, 1]} : vector<8x256xf32> to vector<8x64xf32>
    %68 = vector.extract_strided_slice %63 {offsets = [0, 192], sizes = [8, 64], strides = [1, 1]} : vector<8x256xf32> to vector<8x64xf32>
    %69 = arith.mulf %66, %50 : vector<8x64xf32>
    %70 = arith.mulf %65, %67 : vector<8x64xf32>
    %71 = arith.addf %69, %70 : vector<8x64xf32>
    %72 = math.tanh %71 : vector<8x64xf32>
    %73 = arith.mulf %68, %72 : vector<8x64xf32>
    %c3_i32 = arith.constant 3 : i32
    %c8_i32_23 = arith.constant 8 : i32
    %74 = arith.muli %c3_i32, %c8_i32_23 : i32
    %75 = tpu.assume_multiple %74, 8 : i32
    %76 = arith.index_cast %75 : i32 to index
    %c0_24 = arith.constant 0 : index
    %77 = vector.load %arg8[%76, %c0_24] : memref<64x256xf32, #tpu.memory_space<vmem>>, vector<8x256xf32>
    %cst_25 = arith.constant dense<0.000000e+00> : vector<8x256xf32>
    %78 = tpu.matmul %73, %8, %cst_25 {dimension_numbers = #tpu.dot_dimension_numbers<[1], [0], [0], [1], [0, 0, 1, 1], [], []>} : vector<8x64xf32>, vector<64x256xf32>, vector<8x256xf32> -> vector<8x256xf32>
    %79 = arith.addf %77, %78 : vector<8x256xf32>
    %80 = arith.negf %79 : vector<8x256xf32>
    %81 = math.exp %80 : vector<8x256xf32>
    %cst_26 = arith.constant 1.000000e+00 : f32
    %82 = vector.broadcast %cst_26 : f32 to vector<8x256xf32>
    %83 = arith.addf %82, %81 : vector<8x256xf32>
    %84 = arith.divf %82, %83 : vector<8x256xf32>
    %85 = math.tanh %79 : vector<8x256xf32>
    %86 = vector.extract_strided_slice %84 {offsets = [0, 0], sizes = [8, 64], strides = [1, 1]} : vector<8x256xf32> to vector<8x64xf32>
    %87 = vector.extract_strided_slice %84 {offsets = [0, 64], sizes = [8, 64], strides = [1, 1]} : vector<8x256xf32> to vector<8x64xf32>
    %88 = vector.extract_strided_slice %85 {offsets = [0, 128], sizes = [8, 64], strides = [1, 1]} : vector<8x256xf32> to vector<8x64xf32>
    %89 = vector.extract_strided_slice %84 {offsets = [0, 192], sizes = [8, 64], strides = [1, 1]} : vector<8x256xf32> to vector<8x64xf32>
    %90 = arith.mulf %87, %71 : vector<8x64xf32>
    %91 = arith.mulf %86, %88 : vector<8x64xf32>
    %92 = arith.addf %90, %91 : vector<8x64xf32>
    %93 = math.tanh %92 : vector<8x64xf32>
    %94 = arith.mulf %89, %93 : vector<8x64xf32>
    %c4_i32 = arith.constant 4 : i32
    %c8_i32_27 = arith.constant 8 : i32
    %95 = arith.muli %c4_i32, %c8_i32_27 : i32
    %96 = tpu.assume_multiple %95, 8 : i32
    %97 = arith.index_cast %96 : i32 to index
    %c0_28 = arith.constant 0 : index
    %98 = vector.load %arg8[%97, %c0_28] : memref<64x256xf32, #tpu.memory_space<vmem>>, vector<8x256xf32>
    %cst_29 = arith.constant dense<0.000000e+00> : vector<8x256xf32>
    %99 = tpu.matmul %94, %8, %cst_29 {dimension_numbers = #tpu.dot_dimension_numbers<[1], [0], [0], [1], [0, 0, 1, 1], [], []>} : vector<8x64xf32>, vector<64x256xf32>, vector<8x256xf32> -> vector<8x256xf32>
    %100 = arith.addf %98, %99 : vector<8x256xf32>
    %101 = arith.negf %100 : vector<8x256xf32>
    %102 = math.exp %101 : vector<8x256xf32>
    %cst_30 = arith.constant 1.000000e+00 : f32
    %103 = vector.broadcast %cst_30 : f32 to vector<8x256xf32>
    %104 = arith.addf %103, %102 : vector<8x256xf32>
    %105 = arith.divf %103, %104 : vector<8x256xf32>
    %106 = math.tanh %100 : vector<8x256xf32>
    %107 = vector.extract_strided_slice %105 {offsets = [0, 0], sizes = [8, 64], strides = [1, 1]} : vector<8x256xf32> to vector<8x64xf32>
    %108 = vector.extract_strided_slice %105 {offsets = [0, 64], sizes = [8, 64], strides = [1, 1]} : vector<8x256xf32> to vector<8x64xf32>
    %109 = vector.extract_strided_slice %106 {offsets = [0, 128], sizes = [8, 64], strides = [1, 1]} : vector<8x256xf32> to vector<8x64xf32>
    %110 = vector.extract_strided_slice %105 {offsets = [0, 192], sizes = [8, 64], strides = [1, 1]} : vector<8x256xf32> to vector<8x64xf32>
    %111 = arith.mulf %108, %92 : vector<8x64xf32>
    %112 = arith.mulf %107, %109 : vector<8x64xf32>
    %113 = arith.addf %111, %112 : vector<8x64xf32>
    %114 = math.tanh %113 : vector<8x64xf32>
    %115 = arith.mulf %110, %114 : vector<8x64xf32>
    %c5_i32 = arith.constant 5 : i32
    %c8_i32_31 = arith.constant 8 : i32
    %116 = arith.muli %c5_i32, %c8_i32_31 : i32
    %117 = tpu.assume_multiple %116, 8 : i32
    %118 = arith.index_cast %117 : i32 to index
    %c0_32 = arith.constant 0 : index
    %119 = vector.load %arg8[%118, %c0_32] : memref<64x256xf32, #tpu.memory_space<vmem>>, vector<8x256xf32>
    %cst_33 = arith.constant dense<0.000000e+00> : vector<8x256xf32>
    %120 = tpu.matmul %115, %8, %cst_33 {dimension_numbers = #tpu.dot_dimension_numbers<[1], [0], [0], [1], [0, 0, 1, 1], [], []>} : vector<8x64xf32>, vector<64x256xf32>, vector<8x256xf32> -> vector<8x256xf32>
    %121 = arith.addf %119, %120 : vector<8x256xf32>
    %122 = arith.negf %121 : vector<8x256xf32>
    %123 = math.exp %122 : vector<8x256xf32>
    %cst_34 = arith.constant 1.000000e+00 : f32
    %124 = vector.broadcast %cst_34 : f32 to vector<8x256xf32>
    %125 = arith.addf %124, %123 : vector<8x256xf32>
    %126 = arith.divf %124, %125 : vector<8x256xf32>
    %127 = math.tanh %121 : vector<8x256xf32>
    %128 = vector.extract_strided_slice %126 {offsets = [0, 0], sizes = [8, 64], strides = [1, 1]} : vector<8x256xf32> to vector<8x64xf32>
    %129 = vector.extract_strided_slice %126 {offsets = [0, 64], sizes = [8, 64], strides = [1, 1]} : vector<8x256xf32> to vector<8x64xf32>
    %130 = vector.extract_strided_slice %127 {offsets = [0, 128], sizes = [8, 64], strides = [1, 1]} : vector<8x256xf32> to vector<8x64xf32>
    %131 = vector.extract_strided_slice %126 {offsets = [0, 192], sizes = [8, 64], strides = [1, 1]} : vector<8x256xf32> to vector<8x64xf32>
    %132 = arith.mulf %129, %113 : vector<8x64xf32>
    %133 = arith.mulf %128, %130 : vector<8x64xf32>
    %134 = arith.addf %132, %133 : vector<8x64xf32>
    %135 = math.tanh %134 : vector<8x64xf32>
    %136 = arith.mulf %131, %135 : vector<8x64xf32>
    %c6_i32 = arith.constant 6 : i32
    %c8_i32_35 = arith.constant 8 : i32
    %137 = arith.muli %c6_i32, %c8_i32_35 : i32
    %138 = tpu.assume_multiple %137, 8 : i32
    %139 = arith.index_cast %138 : i32 to index
    %c0_36 = arith.constant 0 : index
    %140 = vector.load %arg8[%139, %c0_36] : memref<64x256xf32, #tpu.memory_space<vmem>>, vector<8x256xf32>
    %cst_37 = arith.constant dense<0.000000e+00> : vector<8x256xf32>
    %141 = tpu.matmul %136, %8, %cst_37 {dimension_numbers = #tpu.dot_dimension_numbers<[1], [0], [0], [1], [0, 0, 1, 1], [], []>} : vector<8x64xf32>, vector<64x256xf32>, vector<8x256xf32> -> vector<8x256xf32>
    %142 = arith.addf %140, %141 : vector<8x256xf32>
    %143 = arith.negf %142 : vector<8x256xf32>
    %144 = math.exp %143 : vector<8x256xf32>
    %cst_38 = arith.constant 1.000000e+00 : f32
    %145 = vector.broadcast %cst_38 : f32 to vector<8x256xf32>
    %146 = arith.addf %145, %144 : vector<8x256xf32>
    %147 = arith.divf %145, %146 : vector<8x256xf32>
    %148 = math.tanh %142 : vector<8x256xf32>
    %149 = vector.extract_strided_slice %147 {offsets = [0, 0], sizes = [8, 64], strides = [1, 1]} : vector<8x256xf32> to vector<8x64xf32>
    %150 = vector.extract_strided_slice %147 {offsets = [0, 64], sizes = [8, 64], strides = [1, 1]} : vector<8x256xf32> to vector<8x64xf32>
    %151 = vector.extract_strided_slice %148 {offsets = [0, 128], sizes = [8, 64], strides = [1, 1]} : vector<8x256xf32> to vector<8x64xf32>
    %152 = vector.extract_strided_slice %147 {offsets = [0, 192], sizes = [8, 64], strides = [1, 1]} : vector<8x256xf32> to vector<8x64xf32>
    %153 = arith.mulf %150, %134 : vector<8x64xf32>
    %154 = arith.mulf %149, %151 : vector<8x64xf32>
    %155 = arith.addf %153, %154 : vector<8x64xf32>
    %156 = math.tanh %155 : vector<8x64xf32>
    %157 = arith.mulf %152, %156 : vector<8x64xf32>
    %c7_i32 = arith.constant 7 : i32
    %c8_i32_39 = arith.constant 8 : i32
    %158 = arith.muli %c7_i32, %c8_i32_39 : i32
    %159 = tpu.assume_multiple %158, 8 : i32
    %160 = arith.index_cast %159 : i32 to index
    %c0_40 = arith.constant 0 : index
    %161 = vector.load %arg8[%160, %c0_40] : memref<64x256xf32, #tpu.memory_space<vmem>>, vector<8x256xf32>
    %cst_41 = arith.constant dense<0.000000e+00> : vector<8x256xf32>
    %162 = tpu.matmul %157, %8, %cst_41 {dimension_numbers = #tpu.dot_dimension_numbers<[1], [0], [0], [1], [0, 0, 1, 1], [], []>} : vector<8x64xf32>, vector<64x256xf32>, vector<8x256xf32> -> vector<8x256xf32>
    %163 = arith.addf %161, %162 : vector<8x256xf32>
    %164 = arith.negf %163 : vector<8x256xf32>
    %165 = math.exp %164 : vector<8x256xf32>
    %cst_42 = arith.constant 1.000000e+00 : f32
    %166 = vector.broadcast %cst_42 : f32 to vector<8x256xf32>
    %167 = arith.addf %166, %165 : vector<8x256xf32>
    %168 = arith.divf %166, %167 : vector<8x256xf32>
    %169 = math.tanh %163 : vector<8x256xf32>
    %170 = vector.extract_strided_slice %168 {offsets = [0, 0], sizes = [8, 64], strides = [1, 1]} : vector<8x256xf32> to vector<8x64xf32>
    %171 = vector.extract_strided_slice %168 {offsets = [0, 64], sizes = [8, 64], strides = [1, 1]} : vector<8x256xf32> to vector<8x64xf32>
    %172 = vector.extract_strided_slice %169 {offsets = [0, 128], sizes = [8, 64], strides = [1, 1]} : vector<8x256xf32> to vector<8x64xf32>
    %173 = vector.extract_strided_slice %168 {offsets = [0, 192], sizes = [8, 64], strides = [1, 1]} : vector<8x256xf32> to vector<8x64xf32>
    %174 = arith.mulf %171, %155 : vector<8x64xf32>
    %175 = arith.mulf %170, %172 : vector<8x64xf32>
    %176 = arith.addf %174, %175 : vector<8x64xf32>
    %177 = math.tanh %176 : vector<8x64xf32>
    %178 = arith.mulf %173, %177 : vector<8x64xf32>
    %c8_i32_43 = arith.constant 8 : i32
    %c0_44 = arith.constant 0 : index
    %c0_45 = arith.constant 0 : index
    %179 = vector.load %arg5[%c0_44, %c0_45] : memref<64x128xf32, #tpu.memory_space<vmem>>, vector<64x128xf32>
    %cst_46 = arith.constant dense<0.000000e+00> : vector<8x128xf32>
    %180 = tpu.matmul %178, %179, %cst_46 {dimension_numbers = #tpu.dot_dimension_numbers<[1], [0], [0], [1], [0, 0, 1, 1], [], []>} : vector<8x64xf32>, vector<64x128xf32>, vector<8x128xf32> -> vector<8x128xf32>
    %c0_47 = arith.constant 0 : index
    %c0_48 = arith.constant 0 : index
    %181 = vector.load %arg6[%c0_47, %c0_48] : memref<1x128xf32, #tpu.memory_space<vmem>>, vector<1x128xf32>
    %182 = vector.broadcast %181 : vector<1x128xf32> to vector<8x128xf32>
    %183 = arith.addf %180, %182 : vector<8x128xf32>
    %c0_49 = arith.constant 0 : index
    %c0_50 = arith.constant 0 : index
    %184 = vector.load %arg7[%c0_49, %c0_50] : memref<8x128xf32, #tpu.memory_space<vmem>>, vector<8x128xf32>
    tpu.vector_store %arg7[%c0_49, %c0_50], %183 {strides = array<i32>} : memref<8x128xf32, #tpu.memory_space<vmem>>, vector<8x128xf32>,
    return
  }
  func.func @transform_0(%arg0: i32) -> (i32, i32, i32) {
    %c0_i32 = arith.constant 0 : i32
    %c0_i32_0 = arith.constant 0 : i32
    %c0_i32_1 = arith.constant 0 : i32
    %c0_i32_2 = arith.constant 0 : i32
    return %c0_i32, %c0_i32_0, %c0_i32_1 : i32, i32, i32
  }
  func.func @transform_1(%arg0: i32) -> (i32, i32) {
    %c0_i32 = arith.constant 0 : i32
    %c0_i32_0 = arith.constant 0 : i32
    %c0_i32_1 = arith.constant 0 : i32
    return %c0_i32, %c0_i32_0 : i32, i32
  }
  func.func @transform_2(%arg0: i32) -> (i32, i32) {
    %c0_i32 = arith.constant 0 : i32
    %c0_i32_0 = arith.constant 0 : i32
    %c0_i32_1 = arith.constant 0 : i32
    return %c0_i32, %c0_i32_0 : i32, i32
  }
  func.func @transform_3(%arg0: i32) -> (i32, i32) {
    %c0_i32 = arith.constant 0 : i32
    %c0_i32_0 = arith.constant 0 : i32
    %c0_i32_1 = arith.constant 0 : i32
    return %c0_i32, %c0_i32_0 : i32, i32
  }
  func.func @transform_4(%arg0: i32) -> (i32, i32) {
    %c0_i32 = arith.constant 0 : i32
    %c0_i32_0 = arith.constant 0 : i32
    %c0_i32_1 = arith.constant 0 : i32
    return %c0_i32, %c0_i32_0 : i32, i32
  }
  func.func @transform_5(%arg0: i32) -> (i32, i32) {
    %c0_i32 = arith.constant 0 : i32
    %c0_i32_0 = arith.constant 0 : i32
    %c0_i32_1 = arith.constant 0 : i32
    return %c0_i32, %c0_i32_0 : i32, i32
  }
  func.func @transform_6(%arg0: i32) -> (i32, i32) {
    %c0_i32 = arith.constant 0 : i32
    %c0_i32_0 = arith.constant 0 : i32
    %c0_i32_1 = arith.constant 0 : i32
    return %c0_i32, %c0_i32_0 : i32, i32
  }
}

</mosaic_0001>

<llo_original>
// kernel: tpu_custom_call.1
$region0: #{tpu_custom_call.1}
  #allocation0 [shape = 'u32[]', space=smem, size = 0x4, offset = 0x4, fixed_abs, tag = 'smem constant byte address 0x4 - core index']
  #allocation1 [shape = 'u32[144,128]{1,0:T(1,128)}', space=vmem, size = 0x12000, scoped, tag = 'internal scratch']
  #allocation2 [shape = 'f32[64,256]{1,0:T(8,128)}', space=vmem, size = 0x10000, scoped, tag = 'scratch operand']
  %s0 = inlined_call_operand.hbm [shape: f32[8,8,28], index: 0, kind: input, shape index: {}]
  %s1 = inlined_call_operand.hbm [shape: f32[28,256], index: 1, kind: input, shape index: {}]
  %s2 = inlined_call_operand.hbm [shape: f32[64,256], index: 2, kind: input, shape index: {}]
  %s3 = inlined_call_operand.vmem [shape: f32[1,256], index: 3, kind: input, shape index: {}]
  %s4 = inlined_call_operand.hbm [shape: f32[64,128], index: 4, kind: input, shape index: {}]
  %s5 = inlined_call_operand.vmem [shape: f32[1,128], index: 5, kind: input, shape index: {}]
  %s6 = inlined_call_operand.hbm [shape: f32[8,128], index: 6, kind: output, shape index: {}]
  %s7 = sld [smem:[#allocation0]]
  $region50: #{tpu_custom_call.1} parent=0
    _
  %s9 = ssub.s32 1, %s7
  %s10 = scalar_select 0, %s9, %s7
  $region1: #{tpu_custom_call.1} parent=0
    #allocation3 [shape = 'u8[32768]{0}', space=vmem, size = 0x8000, scoped, tag = 'input window, operand 0, single buffered']
    #allocation4 [shape = 's32[1]{0}', space=sflag, size = 0x4, scoped, tag = 'scoped memory for tpu_custom_call.1']
    #allocation5 [shape = 's32[1]{0}', space=sflag, size = 0x4, scoped, tag = 'scoped memory for tpu_custom_call.1']
    #allocation6 [shape = 'u8[32768]{0}', space=vmem, size = 0x8000, scoped, tag = 'input window, operand 1, single buffered']
    #allocation7 [shape = 's32[1]{0}', space=sflag, size = 0x4, scoped, tag = 'scoped memory for tpu_custom_call.1']
    #allocation8 [shape = 'u8[65536]{0}', space=vmem, size = 0x10000, scoped, tag = 'input window, operand 2, single buffered']
    #allocation9 [shape = 'u8[32768]{0}', space=vmem, size = 0x8000, scoped, tag = 'input window, operand 4, single buffered']
    #allocation10 [shape = 's32[1]{0}', space=sflag, size = 0x4, scoped, tag = 'scoped memory for tpu_custom_call.1']
    #allocation11 [shape = 'u8[4096]{0}', space=vmem, size = 0x1000, scoped, tag = 'output window, operand 0, single buffered']
    %11 = vsyncpa [#allocation4], 0
    %12 = vsyncpa [#allocation7], 0
    %13 = vsyncpa [#allocation10], 0
    %14 = vsyncpa [#allocation5], 0
    // Predicated region
    $region2: #{tpu_custom_call.1} parent=1 // pred_check
      _
    $region3: #{tpu_custom_call.1} parent=1 // pred_check_branch
      %16 = sbr.rel (0) target = $region5
    $region4: #{tpu_custom_call.1} parent=1 // pred_region
      %s18 = ssub.s32 1024, 1024
      %19 = vsyncadd [#allocation4], %s18
      %s20 = sshll.u32 [#allocation3], 4
      %s21 = int_to_ptr.vmem [resolvable:$true] %s20
      %26 = dma.hbm_to_vmem [thread:$0]  %s0, 1024, %s21, [#allocation4], 128, 128, 8
    $region5: #{tpu_custom_call.1} parent=1 // pred_fallthru
      _
    // Predicated region
    $region6: #{tpu_custom_call.1} parent=1 // pred_check
      _
    $region7: #{tpu_custom_call.1} parent=1 // pred_check_branch
      %28 = sbr.rel (0) target = $region9
    $region8: #{tpu_custom_call.1} parent=1 // pred_region
      %s30 = ssub.s32 1024, 1024
      %31 = vsyncadd [#allocation7], %s30
      %s32 = sshll.u32 [#allocation6], 4
      %s33 = int_to_ptr.vmem [resolvable:$true] %s32
      %38 = dma.hbm_to_vmem [thread:$0]  %s1, 1024, %s33, [#allocation7], 256, 256, 16
    $region9: #{tpu_custom_call.1} parent=1 // pred_fallthru
      _
    // Predicated region
    $region10: #{tpu_custom_call.1} parent=1 // pred_check
      _
    $region11: #{tpu_custom_call.1} parent=1 // pred_check_branch
      %40 = sbr.rel (0) target = $region13
    $region12: #{tpu_custom_call.1} parent=1 // pred_region
      %s42 = ssub.s32 2048, 2048
      %43 = vsyncadd [#allocation7], %s42
      %s44 = sshll.u32 [#allocation8], 4
      %s45 = int_to_ptr.vmem [resolvable:$true] %s44
      %50 = dma.hbm_to_vmem [thread:$0]  %s2, 2048, %s45, [#allocation7], 256, 256, 16
    $region13: #{tpu_custom_call.1} parent=1 // pred_fallthru
      _
    // Predicated region
    $region14: #{tpu_custom_call.1} parent=1 // pred_check
      _
    $region15: #{tpu_custom_call.1} parent=1 // pred_check_branch
      %52 = sbr.rel (0) target = $region17
    $region16: #{tpu_custom_call.1} parent=1 // pred_region
      _
    $region17: #{tpu_custom_call.1} parent=1 // pred_fallthru
      _
    // Predicated region
    $region18: #{tpu_custom_call.1} parent=1 // pred_check
      _
    $region19: #{tpu_custom_call.1} parent=1 // pred_check_branch
      %54 = sbr.rel (0) target = $region21
    $region20: #{tpu_custom_call.1} parent=1 // pred_region
      %s56 = ssub.s32 1024, 1024
      %57 = vsyncadd [#allocation10], %s56
      %s58 = sshll.u32 [#allocation9], 4
      %s59 = int_to_ptr.vmem [resolvable:$true] %s58
      %64 = dma.hbm_to_vmem [thread:$0]  %s4, 1024, %s59, [#allocation10], 128, 128, 8
    $region21: #{tpu_custom_call.1} parent=1 // pred_fallthru
      _
    // Predicated region
    $region22: #{tpu_custom_call.1} parent=1 // pred_check
      _
    $region23: #{tpu_custom_call.1} parent=1 // pred_check_branch
      %66 = sbr.rel (0) target = $region25
    $region24: #{tpu_custom_call.1} parent=1 // pred_region
      _
    $region25: #{tpu_custom_call.1} parent=1 // pred_fallthru
      _
    // Predicated region
    $region26: #{tpu_custom_call.1} parent=1 // pred_check
      _
    $region27: #{tpu_custom_call.1} parent=1 // pred_check_branch
      %68 = sbr.rel (0) target = $region29
    $region28: #{tpu_custom_call.1} parent=1 // pred_region
      %69 = dma.done [#allocation4], 1024
    $region29: #{tpu_custom_call.1} parent=1 // pred_fallthru
      _
    // Predicated region
    $region30: #{tpu_custom_call.1} parent=1 // pred_check
      _
    $region31: #{tpu_custom_call.1} parent=1 // pred_check_branch
      %71 = sbr.rel (0) target = $region33
    $region32: #{tpu_custom_call.1} parent=1 // pred_region
      %72 = dma.done [#allocation7], 1024
    $region33: #{tpu_custom_call.1} parent=1 // pred_fallthru
      _
    // Predicated region
    $region34: #{tpu_custom_call.1} parent=1 // pred_check
      _
    $region35: #{tpu_custom_call.1} parent=1 // pred_check_branch
      %74 = sbr.rel (0) target = $region37
    $region36: #{tpu_custom_call.1} parent=1 // pred_region
      %75 = dma.done [#allocation7], 2048
    $region37: #{tpu_custom_call.1} parent=1 // pred_fallthru
      _
    // Predicated region
    $region38: #{tpu_custom_call.1} parent=1 // pred_check
      _
    $region39: #{tpu_custom_call.1} parent=1 // pred_check_branch
      %77 = sbr.rel (0) target = $region41
    $region40: #{tpu_custom_call.1} parent=1 // pred_region
      %78 = dma.done [#allocation10], 1024
    $region41: #{tpu_custom_call.1} parent=1 // pred_fallthru
      _
    %v79 = vld [vmem:[#allocation3] sm:$0xff]
    %v80 = vld [vmem:[#allocation3 + $0x8] sm:$0xff]
    %v81 = vld [vmem:[#allocation3 + $0x10] sm:$0xff]
    %v82 = vld [vmem:[#allocation3 + $0x18] sm:$0xff]
    %v83 = vld [vmem:[#allocation3 + $0x20] sm:$0xff]
    %v84 = vld [vmem:[#allocation3 + $0x28] sm:$0xff]
    %v85 = vld [vmem:[#allocation3 + $0x30] sm:$0xff]
    %v86 = vld [vmem:[#allocation3 + $0x38] sm:$0xff]
    %v87 = vld [vmem:[#allocation6] sm:$0xff]
    %v88 = vld [vmem:[#allocation6 + $0x8] sm:$0xff]
    %v89 = vld [vmem:[#allocation6 + $0x10] sm:$0xff]
    %v90 = vld [vmem:[#allocation6 + $0x18] sm:$0xff]
    %v91 = vld [vmem:[#allocation6 + $0x20] sm:$0xff]
    %v92 = vld [vmem:[#allocation6 + $0x28] sm:$0xff]
    %v93 = vld [vmem:[#allocation6 + $0x30] sm:$0xf]
    %v94 = vld [vmem:[#allocation6 + $0x38] sm:$0xf]
    %v95 = vld [vmem:[%s3] sm:$0x3]
    %v97 = vlaneseq
    %v98 = vshrl.u32 %v97, 7
    %v99 = vsub.s32 0, %v98
    %v100 = vrot.slane %v95, %v99
    %v101 = vlaneseq
    %v102 = vshrl.u32 %v101, 7
    %v103 = vsub.s32 1, %v102
    %v104 = vrot.slane %v95, %v103
    %vm107 = vcmask 228352
    %v109 = vsel %vm107, %v79, 0
    %v112 = vsel %vm107, %v80, 0
    %v115 = vsel %vm107, %v81, 0
    %v118 = vsel %vm107, %v82, 0
    %v121 = vsel %vm107, %v83, 0
    %v124 = vsel %vm107, %v84, 0
    %v127 = vsel %vm107, %v85, 0
    %v130 = vsel %vm107, %v86, 0
    %vm132 = vcmask 1043456
    %v134 = vsel %vm132, %v93, 0
    %v137 = vsel %vm132, %v94, 0
    %139 = vmatprep.subr.mxu0 %v88
    %140 = vmatpush1.msra.mxu0 %v87
    %141 = vmatprep.subr.mxu0 %v90
    %142 = vmatpush1.msra.mxu0 %v89
    %143 = vmatprep.subr.mxu0 %v92
    %144 = vmatpush1.msra.mxu0 %v91
    %145 = vmatprep.subr.mxu0 %v137
    %146 = vmatpush1.msra.mxu0 %v134
    %147 = vmatprep.subr.mxu0 0.0
    %148 = vmatpush1.msra.mxu0 0.0
    %149 = vmatprep.subr.mxu0 0.0
    %150 = vmatpush1.msra.mxu0 0.0
    %151 = vmatprep.subr.mxu0 0.0
    %152 = vmatpush1.msra.mxu0 0.0
    %153 = vmatprep.subr.mxu0 0.0
    %154 = vmatpush1.msra.mxu0 0.0
    %155 = vmatprep.subr.mxu0 0.0
    %156 = vmatpush1.msra.mxu0 0.0
    %157 = vmatprep.subr.mxu0 0.0
    %158 = vmatpush1.msra.mxu0 0.0
    %159 = vmatprep.subr.mxu0 0.0
    %160 = vmatpush1.msra.mxu0 0.0
    %161 = vmatprep.subr.mxu0 0.0
    %162 = vmatpush1.msra.mxu0 0.0
    %163 = vmatprep.subr.mxu0 0.0
    %164 = vmatpush1.msra.mxu0 0.0
    %165 = vmatprep.subr.mxu0 0.0
    %166 = vmatpush1.msra.mxu0 0.0
    %167 = vmatprep.subr.mxu0 0.0
    %168 = vmatpush1.msra.mxu0 0.0
    %169 = vmatprep.subr.mxu0 0.0
    %170 = vmatpush1.msra.mxu0 0.0
    %171 = vmatprep.subr.mxu0 0.0
    %172 = vmatpush1.msra.mxu0 0.0
    %173 = vmatprep.subr.mxu0 0.0
    %174 = vmatpush1.msra.mxu0 0.0
    %175 = vmatprep.subr.mxu0 0.0
    %176 = vmatpush1.msra.mxu0 0.0
    %177 = vmatprep.subr.mxu0 0.0
    %178 = vmatpush1.msra.mxu0 0.0
    %179 = vmatprep.subr.mxu0 0.0
    %180 = vmatpush1.msra.mxu0 0.0
    %181 = vmatprep.subr.mxu0 0.0
    %182 = vmatpush1.msra.mxu0 0.0
    %183 = vmatprep.subr.mxu0 0.0
    %184 = vmatpush1.msra.mxu0 0.0
    %185 = vmatprep.subr.mxu0 0.0
    %186 = vmatpush1.msra.mxu0 0.0
    %187 = vmatprep.subr.mxu0 0.0
    %188 = vmatpush1.msra.mxu0 0.0
    %189 = vmatprep.subr.mxu0 0.0
    %190 = vmatpush1.msra.mxu0 0.0
    %191 = vmatprep.subr.mxu0 0.0
    %192 = vmatpush1.msra.mxu0 0.0
    %193 = vmatprep.subr.mxu0 0.0
    %194 = vmatpush1.msra.mxu0 0.0
    %195 = vmatprep.subr.mxu0 0.0
    %196 = vmatpush1.msra.mxu0 0.0
    %197 = vmatprep.subr.mxu0 0.0
    %198 = vmatpush1.msra.mxu0 0.0
    %199 = vmatprep.subr.mxu0 0.0
    %200 = vmatpush1.msra.mxu0 0.0
    %201 = vmatprep.subr.mxu0 0.0
    %202 = vmatpush1.msra.mxu0 0.0
    %203 = vmatprep.mubr.f32.mxu0 0.0
    %204 = vmatmul.mubr.f32.gmra.mrb[0].mxu0 %v109
    %v205 = vpop.f32.mrb[0].mxu0
    %v206 = vadd.f32 %v100, %v205
    %v207 = vpop.f32.mrb[0].mxu0
    %v208 = vadd.f32 %v104, %v207
    %209 = vmatprep.mubr.f32.mxu0 0.0
    %210 = vmatmul.mubr.f32.gmra.mrb[0].mxu0 %v112
    %v211 = vpop.f32.mrb[0].mxu0
    %v212 = vadd.f32 %v100, %v211
    %v213 = vpop.f32.mrb[0].mxu0
    %v214 = vadd.f32 %v104, %v213
    %215 = vmatprep.mubr.f32.mxu0 0.0
    %216 = vmatmul.mubr.f32.gmra.mrb[0].mxu0 %v115
    %v217 = vpop.f32.mrb[0].mxu0
    %v218 = vadd.f32 %v100, %v217
    %v219 = vpop.f32.mrb[0].mxu0
    %v220 = vadd.f32 %v104, %v219
    %221 = vmatprep.mubr.f32.mxu0 0.0
    %222 = vmatmul.mubr.f32.gmra.mrb[0].mxu0 %v118
    %v223 = vpop.f32.mrb[0].mxu0
    %v224 = vadd.f32 %v100, %v223
    %v225 = vpop.f32.mrb[0].mxu0
    %v226 = vadd.f32 %v104, %v225
    %227 = vmatprep.mubr.f32.mxu0 0.0
    %228 = vmatmul.mubr.f32.gmra.mrb[0].mxu0 %v121
    %v229 = vpop.f32.mrb[0].mxu0
    %v230 = vadd.f32 %v100, %v229
    %v231 = vpop.f32.mrb[0].mxu0
    %v232 = vadd.f32 %v104, %v231
    %233 = vmatprep.mubr.f32.mxu0 0.0
    %234 = vmatmul.mubr.f32.gmra.mrb[0].mxu0 %v124
    %v235 = vpop.f32.mrb[0].mxu0
    %v236 = vadd.f32 %v100, %v235
    %v237 = vpop.f32.mrb[0].mxu0
    %v238 = vadd.f32 %v104, %v237
    %239 = vmatprep.mubr.f32.mxu0 0.0
    %240 = vmatmul.mubr.f32.gmra.mrb[0].mxu0 %v127
    %v241 = vpop.f32.mrb[0].mxu0
    %v242 = vadd.f32 %v100, %v241
    %v243 = vpop.f32.mrb[0].mxu0
    %v244 = vadd.f32 %v104, %v243
    %245 = vmatprep.mubr.f32.mxu0 0.0
    %246 = vmatmul.mubr.f32.gmra.mrb[0].mxu0 %v130
    %v247 = vpop.f32.mrb[0].mxu0
    %v248 = vadd.f32 %v100, %v247
    %v249 = vpop.f32.mrb[0].mxu0
    %v250 = vadd.f32 %v104, %v249
    %251 = vdwg.mxu0
    %252 = vst [vmem:[#allocation2] sm:$0xff] %v206
    %253 = vst [vmem:[#allocation2 + $0x8] sm:$0xff] %v208
    %254 = vst [vmem:[#allocation2 + $0x10] sm:$0xff] %v212
    %255 = vst [vmem:[#allocation2 + $0x18] sm:$0xff] %v214
    %256 = vst [vmem:[#allocation2 + $0x20] sm:$0xff] %v218
    %257 = vst [vmem:[#allocation2 + $0x28] sm:$0xff] %v220
    %258 = vst [vmem:[#allocation2 + $0x30] sm:$0xff] %v224
    %259 = vst [vmem:[#allocation2 + $0x38] sm:$0xff] %v226
    %260 = vst [vmem:[#allocation2 + $0x40] sm:$0xff] %v230
    %261 = vst [vmem:[#allocation2 + $0x48] sm:$0xff] %v232
    %262 = vst [vmem:[#allocation2 + $0x50] sm:$0xff] %v236
    %263 = vst [vmem:[#allocation2 + $0x58] sm:$0xff] %v238
    %264 = vst [vmem:[#allocation2 + $0x60] sm:$0xff] %v242
    %265 = vst [vmem:[#allocation2 + $0x68] sm:$0xff] %v244
    %266 = vst [vmem:[#allocation2 + $0x70] sm:$0xff] %v248
    %267 = vst [vmem:[#allocation2 + $0x78] sm:$0xff] %v250
    %v268 = vld [vmem:[#allocation8] sm:$0xff]
    %v269 = vld [vmem:[#allocation8 + $0x8] sm:$0xff]
    %v270 = vld [vmem:[#allocation8 + $0x10] sm:$0xff]
    %v271 = vld [vmem:[#allocation8 + $0x18] sm:$0xff]
    %v272 = vld [vmem:[#allocation8 + $0x20] sm:$0xff]
    %v273 = vld [vmem:[#allocation8 + $0x28] sm:$0xff]
    %v274 = vld [vmem:[#allocation8 + $0x30] sm:$0xff]
    %v275 = vld [vmem:[#allocation8 + $0x38] sm:$0xff]
    %v276 = vld [vmem:[#allocation8 + $0x40] sm:$0xff]
    %v277 = vld [vmem:[#allocation8 + $0x48] sm:$0xff]
    %v278 = vld [vmem:[#allocation8 + $0x50] sm:$0xff]
    %v279 = vld [vmem:[#allocation8 + $0x58] sm:$0xff]
    %v280 = vld [vmem:[#allocation8 + $0x60] sm:$0xff]
    %v281 = vld [vmem:[#allocation8 + $0x68] sm:$0xff]
    %v282 = vld [vmem:[#allocation8 + $0x70] sm:$0xff]
    %v283 = vld [vmem:[#allocation8 + $0x78] sm:$0xff]
    %s284 = smul.u32 0, 2
    %s285 = smul.addr %s284, 8
    %s286 = scalar_lea.vmem [#allocation2], %s285
    %v287 = vld [vmem:[%s286] sm:$0xff]
    %v288 = vld [vmem:[%s286 + $0x8] sm:$0xff]
    %vm289 = vcmask 523264
    %v291 = vsel %vm289, 0.0, 0
    %293 = vmatprep.subr.mxu0 %v269
    %294 = vmatpush1.msra.mxu0 %v268
    %295 = vmatprep.subr.mxu0 %v271
    %296 = vmatpush1.msra.mxu0 %v270
    %297 = vmatprep.subr.mxu0 %v273
    %298 = vmatpush1.msra.mxu0 %v272
    %299 = vmatprep.subr.mxu0 %v275
    %300 = vmatpush1.msra.mxu0 %v274
    %301 = vmatprep.subr.mxu0 %v277
    %302 = vmatpush1.msra.mxu0 %v276
    %303 = vmatprep.subr.mxu0 %v279
    %304 = vmatpush1.msra.mxu0 %v278
    %305 = vmatprep.subr.mxu0 %v281
    %306 = vmatpush1.msra.mxu0 %v280
    %307 = vmatprep.subr.mxu0 %v283
    %308 = vmatpush1.msra.mxu0 %v282
    %309 = vmatprep.subr.mxu0 0.0
    %310 = vmatpush1.msra.mxu0 0.0
    %311 = vmatprep.subr.mxu0 0.0
    %312 = vmatpush1.msra.mxu0 0.0
    %313 = vmatprep.subr.mxu0 0.0
    %314 = vmatpush1.msra.mxu0 0.0
    %315 = vmatprep.subr.mxu0 0.0
    %316 = vmatpush1.msra.mxu0 0.0
    %317 = vmatprep.subr.mxu0 0.0
    %318 = vmatpush1.msra.mxu0 0.0
    %319 = vmatprep.subr.mxu0 0.0
    %320 = vmatpush1.msra.mxu0 0.0
    %321 = vmatprep.subr.mxu0 0.0
    %322 = vmatpush1.msra.mxu0 0.0
    %323 = vmatprep.subr.mxu0 0.0
    %324 = vmatpush1.msra.mxu0 0.0
    %325 = vmatprep.subr.mxu0 0.0
    %326 = vmatpush1.msra.mxu0 0.0
    %327 = vmatprep.subr.mxu0 0.0
    %328 = vmatpush1.msra.mxu0 0.0
    %329 = vmatprep.subr.mxu0 0.0
    %330 = vmatpush1.msra.mxu0 0.0
    %331 = vmatprep.subr.mxu0 0.0
    %332 = vmatpush1.msra.mxu0 0.0
    %333 = vmatprep.subr.mxu0 0.0
    %334 = vmatpush1.msra.mxu0 0.0
    %335 = vmatprep.subr.mxu0 0.0
    %336 = vmatpush1.msra.mxu0 0.0
    %337 = vmatprep.subr.mxu0 0.0
    %338 = vmatpush1.msra.mxu0 0.0
    %339 = vmatprep.subr.mxu0 0.0
    %340 = vmatpush1.msra.mxu0 0.0
    %341 = vmatprep.subr.mxu0 0.0
    %342 = vmatpush1.msra.mxu0 0.0
    %343 = vmatprep.subr.mxu0 0.0
    %344 = vmatpush1.msra.mxu0 0.0
    %345 = vmatprep.subr.mxu0 0.0
    %346 = vmatpush1.msra.mxu0 0.0
    %347 = vmatprep.subr.mxu0 0.0
    %348 = vmatpush1.msra.mxu0 0.0
    %349 = vmatprep.subr.mxu0 0.0
    %350 = vmatpush1.msra.mxu0 0.0
    %351 = vmatprep.subr.mxu0 0.0
    %352 = vmatpush1.msra.mxu0 0.0
    %353 = vmatprep.subr.mxu0 0.0
    %354 = vmatpush1.msra.mxu0 0.0
    %355 = vmatprep.subr.mxu0 0.0
    %356 = vmatpush1.msra.mxu0 0.0
    %357 = vmatprep.mubr.f32.mxu0 0.0
    %358 = vmatmul.mubr.f32.gmra.mrb[0].mxu0 %v291
    %v359 = vpop.f32.mrb[0].mxu0
    %v360 = vadd.f32 0.0, %v359
    %v361 = vpop.f32.mrb[0].mxu0
    %v362 = vadd.f32 0.0, %v361
    %363 = vdwg.mxu0
    %v364 = vadd.f32 %v287, %v360
    %v365 = vadd.f32 %v288, %v362
    %v366 = vxor.u32 %v364, 2147483648
    %v367 = vxor.u32 %v365, 2147483648
    %v368 = vmul.f32 %v366, 1.442695
    %v369 = vpow.pop %v368
    %v370 = vmul.f32 %v367, 1.442695
    %v371 = vpow.pop %v370
    %v372 = vadd.f32 %v369, 1.0
    %v373 = vadd.f32 %v371, 1.0
    %v374 = vrcp.pop %v372
    %v375 = vmul.f32 1.0, %v374
    %v376 = vrcp.pop %v373
    %v377 = vmul.f32 1.0, %v376
    %v378 = vtanh.pop %v365
    %v379 = vmul.f32 %v375, 0.0
    %v380 = vmul.f32 %v375, %v378
    %382 = vrot.lane.b32.xlu0 %v380, 64
    %v383 = vpop.permute.xlu0 %382
    %v385 = vadd.f32 %v379, %v383
    %v386 = vtanh.pop %v385
    %v387 = vmul.f32 %v377, %v386
    %s388 = smul.u32 1, 2
    %s389 = smul.addr %s388, 8
    %s390 = scalar_lea.vmem [#allocation2], %s389
    %v391 = vld [vmem:[%s390] sm:$0xff]
    %v392 = vld [vmem:[%s390 + $0x8] sm:$0xff]
    %394 = vrot.lane.b32.xlu0 %v387, 64
    %v395 = vpop.permute.xlu0 %394
    %v396 = vsel %vm289, %v395, 0
    %398 = vmatprep.subr.mxu0 %v269
    %399 = vmatpush1.msra.mxu0 %v268
    %400 = vmatprep.subr.mxu0 %v271
    %401 = vmatpush1.msra.mxu0 %v270
    %402 = vmatprep.subr.mxu0 %v273
    %403 = vmatpush1.msra.mxu0 %v272
    %404 = vmatprep.subr.mxu0 %v275
    %405 = vmatpush1.msra.mxu0 %v274
    %406 = vmatprep.subr.mxu0 %v277
    %407 = vmatpush1.msra.mxu0 %v276
    %408 = vmatprep.subr.mxu0 %v279
    %409 = vmatpush1.msra.mxu0 %v278
    %410 = vmatprep.subr.mxu0 %v281
    %411 = vmatpush1.msra.mxu0 %v280
    %412 = vmatprep.subr.mxu0 %v283
    %413 = vmatpush1.msra.mxu0 %v282
    %414 = vmatprep.subr.mxu0 0.0
    %415 = vmatpush1.msra.mxu0 0.0
    %416 = vmatprep.subr.mxu0 0.0
    %417 = vmatpush1.msra.mxu0 0.0
    %418 = vmatprep.subr.mxu0 0.0
    %419 = vmatpush1.msra.mxu0 0.0
    %420 = vmatprep.subr.mxu0 0.0
    %421 = vmatpush1.msra.mxu0 0.0
    %422 = vmatprep.subr.mxu0 0.0
    %423 = vmatpush1.msra.mxu0 0.0
    %424 = vmatprep.subr.mxu0 0.0
    %425 = vmatpush1.msra.mxu0 0.0
    %426 = vmatprep.subr.mxu0 0.0
    %427 = vmatpush1.msra.mxu0 0.0
    %428 = vmatprep.subr.mxu0 0.0
    %429 = vmatpush1.msra.mxu0 0.0
    %430 = vmatprep.subr.mxu0 0.0
    %431 = vmatpush1.msra.mxu0 0.0
    %432 = vmatprep.subr.mxu0 0.0
    %433 = vmatpush1.msra.mxu0 0.0
    %434 = vmatprep.subr.mxu0 0.0
    %435 = vmatpush1.msra.mxu0 0.0
    %436 = vmatprep.subr.mxu0 0.0
    %437 = vmatpush1.msra.mxu0 0.0
    %438 = vmatprep.subr.mxu0 0.0
    %439 = vmatpush1.msra.mxu0 0.0
    %440 = vmatprep.subr.mxu0 0.0
    %441 = vmatpush1.msra.mxu0 0.0
    %442 = vmatprep.subr.mxu0 0.0
    %443 = vmatpush1.msra.mxu0 0.0
    %444 = vmatprep.subr.mxu0 0.0
    %445 = vmatpush1.msra.mxu0 0.0
    %446 = vmatprep.subr.mxu0 0.0
    %447 = vmatpush1.msra.mxu0 0.0
    %448 = vmatprep.subr.mxu0 0.0
    %449 = vmatpush1.msra.mxu0 0.0
    %450 = vmatprep.subr.mxu0 0.0
    %451 = vmatpush1.msra.mxu0 0.0
    %452 = vmatprep.subr.mxu0 0.0
    %453 = vmatpush1.msra.mxu0 0.0
    %454 = vmatprep.subr.mxu0 0.0
    %455 = vmatpush1.msra.mxu0 0.0
    %456 = vmatprep.subr.mxu0 0.0
    %457 = vmatpush1.msra.mxu0 0.0
    %458 = vmatprep.subr.mxu0 0.0
    %459 = vmatpush1.msra.mxu0 0.0
    %460 = vmatprep.subr.mxu0 0.0
    %461 = vmatpush1.msra.mxu0 0.0
    %462 = vmatprep.mubr.f32.mxu0 0.0
    %463 = vmatmul.mubr.f32.gmra.mrb[0].mxu0 %v396
    %v464 = vpop.f32.mrb[0].mxu0
    %v465 = vadd.f32 0.0, %v464
    %v466 = vpop.f32.mrb[0].mxu0
    %v467 = vadd.f32 0.0, %v466
    %468 = vdwg.mxu0
    %v469 = vadd.f32 %v391, %v465
    %v470 = vadd.f32 %v392, %v467
    %v471 = vxor.u32 %v469, 2147483648
    %v472 = vxor.u32 %v470, 2147483648
    %v473 = vmul.f32 %v471, 1.442695
    %v474 = vpow.pop %v473
    %v475 = vmul.f32 %v472, 1.442695
    %v476 = vpow.pop %v475
    %v477 = vadd.f32 %v474, 1.0
    %v478 = vadd.f32 %v476, 1.0
    %v479 = vrcp.pop %v477
    %v480 = vmul.f32 1.0, %v479
    %v481 = vrcp.pop %v478
    %v482 = vmul.f32 1.0, %v481
    %v483 = vtanh.pop %v470
    %v484 = vmul.f32 %v480, %v385
    %v485 = vmul.f32 %v480, %v483
    %487 = vrot.lane.b32.xlu0 %v485, 64
    %v488 = vpop.permute.xlu0 %487
    %v490 = vadd.f32 %v484, %v488
    %v491 = vtanh.pop %v490
    %v492 = vmul.f32 %v482, %v491
    %s493 = smul.u32 2, 2
    %s494 = smul.addr %s493, 8
    %s495 = scalar_lea.vmem [#allocation2], %s494
    %v496 = vld [vmem:[%s495] sm:$0xff]
    %v497 = vld [vmem:[%s495 + $0x8] sm:$0xff]
    %499 = vrot.lane.b32.xlu0 %v492, 64
    %v500 = vpop.permute.xlu0 %499
    %v501 = vsel %vm289, %v500, 0
    %503 = vmatprep.subr.mxu0 %v269
    %504 = vmatpush1.msra.mxu0 %v268
    %505 = vmatprep.subr.mxu0 %v271
    %506 = vmatpush1.msra.mxu0 %v270
    %507 = vmatprep.subr.mxu0 %v273
    %508 = vmatpush1.msra.mxu0 %v272
    %509 = vmatprep.subr.mxu0 %v275
    %510 = vmatpush1.msra.mxu0 %v274
    %511 = vmatprep.subr.mxu0 %v277
    %512 = vmatpush1.msra.mxu0 %v276
    %513 = vmatprep.subr.mxu0 %v279
    %514 = vmatpush1.msra.mxu0 %v278
    %515 = vmatprep.subr.mxu0 %v281
    %516 = vmatpush1.msra.mxu0 %v280
    %517 = vmatprep.subr.mxu0 %v283
    %518 = vmatpush1.msra.mxu0 %v282
    %519 = vmatprep.subr.mxu0 0.0
    %520 = vmatpush1.msra.mxu0 0.0
    %521 = vmatprep.subr.mxu0 0.0
    %522 = vmatpush1.msra.mxu0 0.0
    %523 = vmatprep.subr.mxu0 0.0
    %524 = vmatpush1.msra.mxu0 0.0
    %525 = vmatprep.subr.mxu0 0.0
    %526 = vmatpush1.msra.mxu0 0.0
    %527 = vmatprep.subr.mxu0 0.0
    %528 = vmatpush1.msra.mxu0 0.0
    %529 = vmatprep.subr.mxu0 0.0
    %530 = vmatpush1.msra.mxu0 0.0
    %531 = vmatprep.subr.mxu0 0.0
    %532 = vmatpush1.msra.mxu0 0.0
    %533 = vmatprep.subr.mxu0 0.0
    %534 = vmatpush1.msra.mxu0 0.0
    %535 = vmatprep.subr.mxu0 0.0
    %536 = vmatpush1.msra.mxu0 0.0
    %537 = vmatprep.subr.mxu0 0.0
    %538 = vmatpush1.msra.mxu0 0.0
    %539 = vmatprep.subr.mxu0 0.0
    %540 = vmatpush1.msra.mxu0 0.0
    %541 = vmatprep.subr.mxu0 0.0
    %542 = vmatpush1.msra.mxu0 0.0
    %543 = vmatprep.subr.mxu0 0.0
    %544 = vmatpush1.msra.mxu0 0.0
    %545 = vmatprep.subr.mxu0 0.0
    %546 = vmatpush1.msra.mxu0 0.0
    %547 = vmatprep.subr.mxu0 0.0
    %548 = vmatpush1.msra.mxu0 0.0
    %549 = vmatprep.subr.mxu0 0.0
    %550 = vmatpush1.msra.mxu0 0.0
    %551 = vmatprep.subr.mxu0 0.0
    %552 = vmatpush1.msra.mxu0 0.0
    %553 = vmatprep.subr.mxu0 0.0
    %554 = vmatpush1.msra.mxu0 0.0
    %555 = vmatprep.subr.mxu0 0.0
    %556 = vmatpush1.msra.mxu0 0.0
    %557 = vmatprep.subr.mxu0 0.0
    %558 = vmatpush1.msra.mxu0 0.0
    %559 = vmatprep.subr.mxu0 0.0
    %560 = vmatpush1.msra.mxu0 0.0
    %561 = vmatprep.subr.mxu0 0.0
    %562 = vmatpush1.msra.mxu0 0.0
    %563 = vmatprep.subr.mxu0 0.0
    %564 = vmatpush1.msra.mxu0 0.0
    %565 = vmatprep.subr.mxu0 0.0
    %566 = vmatpush1.msra.mxu0 0.0
    %567 = vmatprep.mubr.f32.mxu0 0.0
    %568 = vmatmul.mubr.f32.gmra.mrb[0].mxu0 %v501
    %v569 = vpop.f32.mrb[0].mxu0
    %v570 = vadd.f32 0.0, %v569
    %v571 = vpop.f32.mrb[0].mxu0
    %v572 = vadd.f32 0.0, %v571
    %573 = vdwg.mxu0
    %v574 = vadd.f32 %v496, %v570
    %v575 = vadd.f32 %v497, %v572
    %v576 = vxor.u32 %v574, 2147483648
    %v577 = vxor.u32 %v575, 2147483648
    %v578 = vmul.f32 %v576, 1.442695
    %v579 = vpow.pop %v578
    %v580 = vmul.f32 %v577, 1.442695
    %v581 = vpow.pop %v580
    %v582 = vadd.f32 %v579, 1.0
    %v583 = vadd.f32 %v581, 1.0
    %v584 = vrcp.pop %v582
    %v585 = vmul.f32 1.0, %v584
    %v586 = vrcp.pop %v583
    %v587 = vmul.f32 1.0, %v586
    %v588 = vtanh.pop %v575
    %v589 = vmul.f32 %v585, %v490
    %v590 = vmul.f32 %v585, %v588
    %592 = vrot.lane.b32.xlu0 %v590, 64
    %v593 = vpop.permute.xlu0 %592
    %v595 = vadd.f32 %v589, %v593
    %v596 = vtanh.pop %v595
    %v597 = vmul.f32 %v587, %v596
    %s598 = smul.u32 3, 2
    %s599 = smul.addr %s598, 8
    %s600 = scalar_lea.vmem [#allocation2], %s599
    %v601 = vld [vmem:[%s600] sm:$0xff]
    %v602 = vld [vmem:[%s600 + $0x8] sm:$0xff]
    %604 = vrot.lane.b32.xlu0 %v597, 64
    %v605 = vpop.permute.xlu0 %604
    %v606 = vsel %vm289, %v605, 0
    %608 = vmatprep.subr.mxu0 %v269
    %609 = vmatpush1.msra.mxu0 %v268
    %610 = vmatprep.subr.mxu0 %v271
    %611 = vmatpush1.msra.mxu0 %v270
    %612 = vmatprep.subr.mxu0 %v273
    %613 = vmatpush1.msra.mxu0 %v272
    %614 = vmatprep.subr.mxu0 %v275
    %615 = vmatpush1.msra.mxu0 %v274
    %616 = vmatprep.subr.mxu0 %v277
    %617 = vmatpush1.msra.mxu0 %v276
    %618 = vmatprep.subr.mxu0 %v279
    %619 = vmatpush1.msra.mxu0 %v278
    %620 = vmatprep.subr.mxu0 %v281
    %621 = vmatpush1.msra.mxu0 %v280
    %622 = vmatprep.subr.mxu0 %v283
    %623 = vmatpush1.msra.mxu0 %v282
    %624 = vmatprep.subr.mxu0 0.0
    %625 = vmatpush1.msra.mxu0 0.0
    %626 = vmatprep.subr.mxu0 0.0
    %627 = vmatpush1.msra.mxu0 0.0
    %628 = vmatprep.subr.mxu0 0.0
    %629 = vmatpush1.msra.mxu0 0.0
    %630 = vmatprep.subr.mxu0 0.0
    %631 = vmatpush1.msra.mxu0 0.0
    %632 = vmatprep.subr.mxu0 0.0
    %633 = vmatpush1.msra.mxu0 0.0
    %634 = vmatprep.subr.mxu0 0.0
    %635 = vmatpush1.msra.mxu0 0.0
    %636 = vmatprep.subr.mxu0 0.0
    %637 = vmatpush1.msra.mxu0 0.0
    %638 = vmatprep.subr.mxu0 0.0
    %639 = vmatpush1.msra.mxu0 0.0
    %640 = vmatprep.subr.mxu0 0.0
    %641 = vmatpush1.msra.mxu0 0.0
    %642 = vmatprep.subr.mxu0 0.0
    %643 = vmatpush1.msra.mxu0 0.0
    %644 = vmatprep.subr.mxu0 0.0
    %645 = vmatpush1.msra.mxu0 0.0
    %646 = vmatprep.subr.mxu0 0.0
    %647 = vmatpush1.msra.mxu0 0.0
    %648 = vmatprep.subr.mxu0 0.0
    %649 = vmatpush1.msra.mxu0 0.0
    %650 = vmatprep.subr.mxu0 0.0
    %651 = vmatpush1.msra.mxu0 0.0
    %652 = vmatprep.subr.mxu0 0.0
    %653 = vmatpush1.msra.mxu0 0.0
    %654 = vmatprep.subr.mxu0 0.0
    %655 = vmatpush1.msra.mxu0 0.0
    %656 = vmatprep.subr.mxu0 0.0
    %657 = vmatpush1.msra.mxu0 0.0
    %658 = vmatprep.subr.mxu0 0.0
    %659 = vmatpush1.msra.mxu0 0.0
    %660 = vmatprep.subr.mxu0 0.0
    %661 = vmatpush1.msra.mxu0 0.0
    %662 = vmatprep.subr.mxu0 0.0
    %663 = vmatpush1.msra.mxu0 0.0
    %664 = vmatprep.subr.mxu0 0.0
    %665 = vmatpush1.msra.mxu0 0.0
    %666 = vmatprep.subr.mxu0 0.0
    %667 = vmatpush1.msra.mxu0 0.0
    %668 = vmatprep.subr.mxu0 0.0
    %669 = vmatpush1.msra.mxu0 0.0
    %670 = vmatprep.subr.mxu0 0.0
    %671 = vmatpush1.msra.mxu0 0.0
    %672 = vmatprep.mubr.f32.mxu0 0.0
    %673 = vmatmul.mubr.f32.gmra.mrb[0].mxu0 %v606
    %v674 = vpop.f32.mrb[0].mxu0
    %v675 = vadd.f32 0.0, %v674
    %v676 = vpop.f32.mrb[0].mxu0
    %v677 = vadd.f32 0.0, %v676
    %678 = vdwg.mxu0
    %v679 = vadd.f32 %v601, %v675
    %v680 = vadd.f32 %v602, %v677
    %v681 = vxor.u32 %v679, 2147483648
    %v682 = vxor.u32 %v680, 2147483648
    %v683 = vmul.f32 %v681, 1.442695
    %v684 = vpow.pop %v683
    %v685 = vmul.f32 %v682, 1.442695
    %v686 = vpow.pop %v685
    %v687 = vadd.f32 %v684, 1.0
    %v688 = vadd.f32 %v686, 1.0
    %v689 = vrcp.pop %v687
    %v690 = vmul.f32 1.0, %v689
    %v691 = vrcp.pop %v688
    %v692 = vmul.f32 1.0, %v691
    %v693 = vtanh.pop %v680
    %v694 = vmul.f32 %v690, %v595
    %v695 = vmul.f32 %v690, %v693
    %697 = vrot.lane.b32.xlu0 %v695, 64
    %v698 = vpop.permute.xlu0 %697
    %v700 = vadd.f32 %v694, %v698
    %v701 = vtanh.pop %v700
    %v702 = vmul.f32 %v692, %v701
    %s703 = smul.u32 4, 2
    %s704 = smul.addr %s703, 8
    %s705 = scalar_lea.vmem [#allocation2], %s704
    %v706 = vld [vmem:[%s705] sm:$0xff]
    %v707 = vld [vmem:[%s705 + $0x8] sm:$0xff]
    %709 = vrot.lane.b32.xlu0 %v702, 64
    %v710 = vpop.permute.xlu0 %709
    %v711 = vsel %vm289, %v710, 0
    %713 = vmatprep.subr.mxu0 %v269
    %714 = vmatpush1.msra.mxu0 %v268
    %715 = vmatprep.subr.mxu0 %v271
    %716 = vmatpush1.msra.mxu0 %v270
    %717 = vmatprep.subr.mxu0 %v273
    %718 = vmatpush1.msra.mxu0 %v272
    %719 = vmatprep.subr.mxu0 %v275
    %720 = vmatpush1.msra.mxu0 %v274
    %721 = vmatprep.subr.mxu0 %v277
    %722 = vmatpush1.msra.mxu0 %v276
    %723 = vmatprep.subr.mxu0 %v279
    %724 = vmatpush1.msra.mxu0 %v278
    %725 = vmatprep.subr.mxu0 %v281
    %726 = vmatpush1.msra.mxu0 %v280
    %727 = vmatprep.subr.mxu0 %v283
    %728 = vmatpush1.msra.mxu0 %v282
    %729 = vmatprep.subr.mxu0 0.0
    %730 = vmatpush1.msra.mxu0 0.0
    %731 = vmatprep.subr.mxu0 0.0
    %732 = vmatpush1.msra.mxu0 0.0
    %733 = vmatprep.subr.mxu0 0.0
    %734 = vmatpush1.msra.mxu0 0.0
    %735 = vmatprep.subr.mxu0 0.0
    %736 = vmatpush1.msra.mxu0 0.0
    %737 = vmatprep.subr.mxu0 0.0
    %738 = vmatpush1.msra.mxu0 0.0
    %739 = vmatprep.subr.mxu0 0.0
    %740 = vmatpush1.msra.mxu0 0.0
    %741 = vmatprep.subr.mxu0 0.0
    %742 = vmatpush1.msra.mxu0 0.0
    %743 = vmatprep.subr.mxu0 0.0
    %744 = vmatpush1.msra.mxu0 0.0
    %745 = vmatprep.subr.mxu0 0.0
    %746 = vmatpush1.msra.mxu0 0.0
    %747 = vmatprep.subr.mxu0 0.0
    %748 = vmatpush1.msra.mxu0 0.0
    %749 = vmatprep.subr.mxu0 0.0
    %750 = vmatpush1.msra.mxu0 0.0
    %751 = vmatprep.subr.mxu0 0.0
    %752 = vmatpush1.msra.mxu0 0.0
    %753 = vmatprep.subr.mxu0 0.0
    %754 = vmatpush1.msra.mxu0 0.0
    %755 = vmatprep.subr.mxu0 0.0
    %756 = vmatpush1.msra.mxu0 0.0
    %757 = vmatprep.subr.mxu0 0.0
    %758 = vmatpush1.msra.mxu0 0.0
    %759 = vmatprep.subr.mxu0 0.0
    %760 = vmatpush1.msra.mxu0 0.0
    %761 = vmatprep.subr.mxu0 0.0
    %762 = vmatpush1.msra.mxu0 0.0
    %763 = vmatprep.subr.mxu0 0.0
    %764 = vmatpush1.msra.mxu0 0.0
    %765 = vmatprep.subr.mxu0 0.0
    %766 = vmatpush1.msra.mxu0 0.0
    %767 = vmatprep.subr.mxu0 0.0
    %768 = vmatpush1.msra.mxu0 0.0
    %769 = vmatprep.subr.mxu0 0.0
    %770 = vmatpush1.msra.mxu0 0.0
    %771 = vmatprep.subr.mxu0 0.0
    %772 = vmatpush1.msra.mxu0 0.0
    %773 = vmatprep.subr.mxu0 0.0
    %774 = vmatpush1.msra.mxu0 0.0
    %775 = vmatprep.subr.mxu0 0.0
    %776 = vmatpush1.msra.mxu0 0.0
    %777 = vmatprep.mubr.f32.mxu0 0.0
    %778 = vmatmul.mubr.f32.gmra.mrb[0].mxu0 %v711
    %v779 = vpop.f32.mrb[0].mxu0
    %v780 = vadd.f32 0.0, %v779
    %v781 = vpop.f32.mrb[0].mxu0
    %v782 = vadd.f32 0.0, %v781
    %783 = vdwg.mxu0
    %v784 = vadd.f32 %v706, %v780
    %v785 = vadd.f32 %v707, %v782
    %v786 = vxor.u32 %v784, 2147483648
    %v787 = vxor.u32 %v785, 2147483648
    %v788 = vmul.f32 %v786, 1.442695
    %v789 = vpow.pop %v788
    %v790 = vmul.f32 %v787, 1.442695
    %v791 = vpow.pop %v790
    %v792 = vadd.f32 %v789, 1.0
    %v793 = vadd.f32 %v791, 1.0
    %v794 = vrcp.pop %v792
    %v795 = vmul.f32 1.0, %v794
    %v796 = vrcp.pop %v793
    %v797 = vmul.f32 1.0, %v796
    %v798 = vtanh.pop %v785
    %v799 = vmul.f32 %v795, %v700
    %v800 = vmul.f32 %v795, %v798
    %802 = vrot.lane.b32.xlu0 %v800, 64
    %v803 = vpop.permute.xlu0 %802
    %v805 = vadd.f32 %v799, %v803
    %v806 = vtanh.pop %v805
    %v807 = vmul.f32 %v797, %v806
    %s808 = smul.u32 5, 2
    %s809 = smul.addr %s808, 8
    %s810 = scalar_lea.vmem [#allocation2], %s809
    %v811 = vld [vmem:[%s810] sm:$0xff]
    %v812 = vld [vmem:[%s810 + $0x8] sm:$0xff]
    %814 = vrot.lane.b32.xlu0 %v807, 64
    %v815 = vpop.permute.xlu0 %814
    %v816 = vsel %vm289, %v815, 0
    %818 = vmatprep.subr.mxu0 %v269
    %819 = vmatpush1.msra.mxu0 %v268
    %820 = vmatprep.subr.mxu0 %v271
    %821 = vmatpush1.msra.mxu0 %v270
    %822 = vmatprep.subr.mxu0 %v273
    %823 = vmatpush1.msra.mxu0 %v272
    %824 = vmatprep.subr.mxu0 %v275
    %825 = vmatpush1.msra.mxu0 %v274
    %826 = vmatprep.subr.mxu0 %v277
    %827 = vmatpush1.msra.mxu0 %v276
    %828 = vmatprep.subr.mxu0 %v279
    %829 = vmatpush1.msra.mxu0 %v278
    %830 = vmatprep.subr.mxu0 %v281
    %831 = vmatpush1.msra.mxu0 %v280
    %832 = vmatprep.subr.mxu0 %v283
    %833 = vmatpush1.msra.mxu0 %v282
    %834 = vmatprep.subr.mxu0 0.0
    %835 = vmatpush1.msra.mxu0 0.0
    %836 = vmatprep.subr.mxu0 0.0
    %837 = vmatpush1.msra.mxu0 0.0
    %838 = vmatprep.subr.mxu0 0.0
    %839 = vmatpush1.msra.mxu0 0.0
    %840 = vmatprep.subr.mxu0 0.0
    %841 = vmatpush1.msra.mxu0 0.0
    %842 = vmatprep.subr.mxu0 0.0
    %843 = vmatpush1.msra.mxu0 0.0
    %844 = vmatprep.subr.mxu0 0.0
    %845 = vmatpush1.msra.mxu0 0.0
    %846 = vmatprep.subr.mxu0 0.0
    %847 = vmatpush1.msra.mxu0 0.0
    %848 = vmatprep.subr.mxu0 0.0
    %849 = vmatpush1.msra.mxu0 0.0
    %850 = vmatprep.subr.mxu0 0.0
    %851 = vmatpush1.msra.mxu0 0.0
    %852 = vmatprep.subr.mxu0 0.0
    %853 = vmatpush1.msra.mxu0 0.0
    %854 = vmatprep.subr.mxu0 0.0
    %855 = vmatpush1.msra.mxu0 0.0
    %856 = vmatprep.subr.mxu0 0.0
    %857 = vmatpush1.msra.mxu0 0.0
    %858 = vmatprep.subr.mxu0 0.0
    %859 = vmatpush1.msra.mxu0 0.0
    %860 = vmatprep.subr.mxu0 0.0
    %861 = vmatpush1.msra.mxu0 0.0
    %862 = vmatprep.subr.mxu0 0.0
    %863 = vmatpush1.msra.mxu0 0.0
    %864 = vmatprep.subr.mxu0 0.0
    %865 = vmatpush1.msra.mxu0 0.0
    %866 = vmatprep.subr.mxu0 0.0
    %867 = vmatpush1.msra.mxu0 0.0
    %868 = vmatprep.subr.mxu0 0.0
    %869 = vmatpush1.msra.mxu0 0.0
    %870 = vmatprep.subr.mxu0 0.0
    %871 = vmatpush1.msra.mxu0 0.0
    %872 = vmatprep.subr.mxu0 0.0
    %873 = vmatpush1.msra.mxu0 0.0
    %874 = vmatprep.subr.mxu0 0.0
    %875 = vmatpush1.msra.mxu0 0.0
    %876 = vmatprep.subr.mxu0 0.0
    %877 = vmatpush1.msra.mxu0 0.0
    %878 = vmatprep.subr.mxu0 0.0
    %879 = vmatpush1.msra.mxu0 0.0
    %880 = vmatprep.subr.mxu0 0.0
    %881 = vmatpush1.msra.mxu0 0.0
    %882 = vmatprep.mubr.f32.mxu0 0.0
    %883 = vmatmul.mubr.f32.gmra.mrb[0].mxu0 %v816
    %v884 = vpop.f32.mrb[0].mxu0
    %v885 = vadd.f32 0.0, %v884
    %v886 = vpop.f32.mrb[0].mxu0
    %v887 = vadd.f32 0.0, %v886
    %888 = vdwg.mxu0
    %v889 = vadd.f32 %v811, %v885
    %v890 = vadd.f32 %v812, %v887
    %v891 = vxor.u32 %v889, 2147483648
    %v892 = vxor.u32 %v890, 2147483648
    %v893 = vmul.f32 %v891, 1.442695
    %v894 = vpow.pop %v893
    %v895 = vmul.f32 %v892, 1.442695
    %v896 = vpow.pop %v895
    %v897 = vadd.f32 %v894, 1.0
    %v898 = vadd.f32 %v896, 1.0
    %v899 = vrcp.pop %v897
    %v900 = vmul.f32 1.0, %v899
    %v901 = vrcp.pop %v898
    %v902 = vmul.f32 1.0, %v901
    %v903 = vtanh.pop %v890
    %v904 = vmul.f32 %v900, %v805
    %v905 = vmul.f32 %v900, %v903
    %907 = vrot.lane.b32.xlu0 %v905, 64
    %v908 = vpop.permute.xlu0 %907
    %v910 = vadd.f32 %v904, %v908
    %v911 = vtanh.pop %v910
    %v912 = vmul.f32 %v902, %v911
    %s913 = smul.u32 6, 2
    %s914 = smul.addr %s913, 8
    %s915 = scalar_lea.vmem [#allocation2], %s914
    %v916 = vld [vmem:[%s915] sm:$0xff]
    %v917 = vld [vmem:[%s915 + $0x8] sm:$0xff]
    %919 = vrot.lane.b32.xlu0 %v912, 64
    %v920 = vpop.permute.xlu0 %919
    %v921 = vsel %vm289, %v920, 0
    %923 = vmatprep.subr.mxu0 %v269
    %924 = vmatpush1.msra.mxu0 %v268
    %925 = vmatprep.subr.mxu0 %v271
    %926 = vmatpush1.msra.mxu0 %v270
    %927 = vmatprep.subr.mxu0 %v273
    %928 = vmatpush1.msra.mxu0 %v272
    %929 = vmatprep.subr.mxu0 %v275
    %930 = vmatpush1.msra.mxu0 %v274
    %931 = vmatprep.subr.mxu0 %v277
    %932 = vmatpush1.msra.mxu0 %v276
    %933 = vmatprep.subr.mxu0 %v279
    %934 = vmatpush1.msra.mxu0 %v278
    %935 = vmatprep.subr.mxu0 %v281
    %936 = vmatpush1.msra.mxu0 %v280
    %937 = vmatprep.subr.mxu0 %v283
    %938 = vmatpush1.msra.mxu0 %v282
    %939 = vmatprep.subr.mxu0 0.0
    %940 = vmatpush1.msra.mxu0 0.0
    %941 = vmatprep.subr.mxu0 0.0
    %942 = vmatpush1.msra.mxu0 0.0
    %943 = vmatprep.subr.mxu0 0.0
    %944 = vmatpush1.msra.mxu0 0.0
    %945 = vmatprep.subr.mxu0 0.0
    %946 = vmatpush1.msra.mxu0 0.0
    %947 = vmatprep.subr.mxu0 0.0
    %948 = vmatpush1.msra.mxu0 0.0
    %949 = vmatprep.subr.mxu0 0.0
    %950 = vmatpush1.msra.mxu0 0.0
    %951 = vmatprep.subr.mxu0 0.0
    %952 = vmatpush1.msra.mxu0 0.0
    %953 = vmatprep.subr.mxu0 0.0
    %954 = vmatpush1.msra.mxu0 0.0
    %955 = vmatprep.subr.mxu0 0.0
    %956 = vmatpush1.msra.mxu0 0.0
    %957 = vmatprep.subr.mxu0 0.0
    %958 = vmatpush1.msra.mxu0 0.0
    %959 = vmatprep.subr.mxu0 0.0
    %960 = vmatpush1.msra.mxu0 0.0
    %961 = vmatprep.subr.mxu0 0.0
    %962 = vmatpush1.msra.mxu0 0.0
    %963 = vmatprep.subr.mxu0 0.0
    %964 = vmatpush1.msra.mxu0 0.0
    %965 = vmatprep.subr.mxu0 0.0
    %966 = vmatpush1.msra.mxu0 0.0
    %967 = vmatprep.subr.mxu0 0.0
    %968 = vmatpush1.msra.mxu0 0.0
    %969 = vmatprep.subr.mxu0 0.0
    %970 = vmatpush1.msra.mxu0 0.0
    %971 = vmatprep.subr.mxu0 0.0
    %972 = vmatpush1.msra.mxu0 0.0
    %973 = vmatprep.subr.mxu0 0.0
    %974 = vmatpush1.msra.mxu0 0.0
    %975 = vmatprep.subr.mxu0 0.0
    %976 = vmatpush1.msra.mxu0 0.0
    %977 = vmatprep.subr.mxu0 0.0
    %978 = vmatpush1.msra.mxu0 0.0
    %979 = vmatprep.subr.mxu0 0.0
    %980 = vmatpush1.msra.mxu0 0.0
    %981 = vmatprep.subr.mxu0 0.0
    %982 = vmatpush1.msra.mxu0 0.0
    %983 = vmatprep.subr.mxu0 0.0
    %984 = vmatpush1.msra.mxu0 0.0
    %985 = vmatprep.subr.mxu0 0.0
    %986 = vmatpush1.msra.mxu0 0.0
    %987 = vmatprep.mubr.f32.mxu0 0.0
    %988 = vmatmul.mubr.f32.gmra.mrb[0].mxu0 %v921
    %v989 = vpop.f32.mrb[0].mxu0
    %v990 = vadd.f32 0.0, %v989
    %v991 = vpop.f32.mrb[0].mxu0
    %v992 = vadd.f32 0.0, %v991
    %993 = vdwg.mxu0
    %v994 = vadd.f32 %v916, %v990
    %v995 = vadd.f32 %v917, %v992
    %v996 = vxor.u32 %v994, 2147483648
    %v997 = vxor.u32 %v995, 2147483648
    %v998 = vmul.f32 %v996, 1.442695
    %v999 = vpow.pop %v998
    %v1000 = vmul.f32 %v997, 1.442695
    %v1001 = vpow.pop %v1000
    %v1002 = vadd.f32 %v999, 1.0
    %v1003 = vadd.f32 %v1001, 1.0
    %v1004 = vrcp.pop %v1002
    %v1005 = vmul.f32 1.0, %v1004
    %v1006 = vrcp.pop %v1003
    %v1007 = vmul.f32 1.0, %v1006
    %v1008 = vtanh.pop %v995
    %v1009 = vmul.f32 %v1005, %v910
    %v1010 = vmul.f32 %v1005, %v1008
    %1012 = vrot.lane.b32.xlu0 %v1010, 64
    %v1013 = vpop.permute.xlu0 %1012
    %v1015 = vadd.f32 %v1009, %v1013
    %v1016 = vtanh.pop %v1015
    %v1017 = vmul.f32 %v1007, %v1016
    %s1018 = smul.u32 7, 2
    %s1019 = smul.addr %s1018, 8
    %s1020 = scalar_lea.vmem [#allocation2], %s1019
    %v1021 = vld [vmem:[%s1020] sm:$0xff]
    %v1022 = vld [vmem:[%s1020 + $0x8] sm:$0xff]
    %1024 = vrot.lane.b32.xlu0 %v1017, 64
    %v1025 = vpop.permute.xlu0 %1024
    %v1026 = vsel %vm289, %v1025, 0
    %1028 = vmatprep.subr.mxu0 %v269
    %1029 = vmatpush1.msra.mxu0 %v268
    %1030 = vmatprep.subr.mxu0 %v271
    %1031 = vmatpush1.msra.mxu0 %v270
    %1032 = vmatprep.subr.mxu0 %v273
    %1033 = vmatpush1.msra.mxu0 %v272
    %1034 = vmatprep.subr.mxu0 %v275
    %1035 = vmatpush1.msra.mxu0 %v274
    %1036 = vmatprep.subr.mxu0 %v277
    %1037 = vmatpush1.msra.mxu0 %v276
    %1038 = vmatprep.subr.mxu0 %v279
    %1039 = vmatpush1.msra.mxu0 %v278
    %1040 = vmatprep.subr.mxu0 %v281
    %1041 = vmatpush1.msra.mxu0 %v280
    %1042 = vmatprep.subr.mxu0 %v283
    %1043 = vmatpush1.msra.mxu0 %v282
    %1044 = vmatprep.subr.mxu0 0.0
    %1045 = vmatpush1.msra.mxu0 0.0
    %1046 = vmatprep.subr.mxu0 0.0
    %1047 = vmatpush1.msra.mxu0 0.0
    %1048 = vmatprep.subr.mxu0 0.0
    %1049 = vmatpush1.msra.mxu0 0.0
    %1050 = vmatprep.subr.mxu0 0.0
    %1051 = vmatpush1.msra.mxu0 0.0
    %1052 = vmatprep.subr.mxu0 0.0
    %1053 = vmatpush1.msra.mxu0 0.0
    %1054 = vmatprep.subr.mxu0 0.0
    %1055 = vmatpush1.msra.mxu0 0.0
    %1056 = vmatprep.subr.mxu0 0.0
    %1057 = vmatpush1.msra.mxu0 0.0
    %1058 = vmatprep.subr.mxu0 0.0
    %1059 = vmatpush1.msra.mxu0 0.0
    %1060 = vmatprep.subr.mxu0 0.0
    %1061 = vmatpush1.msra.mxu0 0.0
    %1062 = vmatprep.subr.mxu0 0.0
    %1063 = vmatpush1.msra.mxu0 0.0
    %1064 = vmatprep.subr.mxu0 0.0
    %1065 = vmatpush1.msra.mxu0 0.0
    %1066 = vmatprep.subr.mxu0 0.0
    %1067 = vmatpush1.msra.mxu0 0.0
    %1068 = vmatprep.subr.mxu0 0.0
    %1069 = vmatpush1.msra.mxu0 0.0
    %1070 = vmatprep.subr.mxu0 0.0
    %1071 = vmatpush1.msra.mxu0 0.0
    %1072 = vmatprep.subr.mxu0 0.0
    %1073 = vmatpush1.msra.mxu0 0.0
    %1074 = vmatprep.subr.mxu0 0.0
    %1075 = vmatpush1.msra.mxu0 0.0
    %1076 = vmatprep.subr.mxu0 0.0
    %1077 = vmatpush1.msra.mxu0 0.0
    %1078 = vmatprep.subr.mxu0 0.0
    %1079 = vmatpush1.msra.mxu0 0.0
    %1080 = vmatprep.subr.mxu0 0.0
    %1081 = vmatpush1.msra.mxu0 0.0
    %1082 = vmatprep.subr.mxu0 0.0
    %1083 = vmatpush1.msra.mxu0 0.0
    %1084 = vmatprep.subr.mxu0 0.0
    %1085 = vmatpush1.msra.mxu0 0.0
    %1086 = vmatprep.subr.mxu0 0.0
    %1087 = vmatpush1.msra.mxu0 0.0
    %1088 = vmatprep.subr.mxu0 0.0
    %1089 = vmatpush1.msra.mxu0 0.0
    %1090 = vmatprep.subr.mxu0 0.0
    %1091 = vmatpush1.msra.mxu0 0.0
    %1092 = vmatprep.mubr.f32.mxu0 0.0
    %1093 = vmatmul.mubr.f32.gmra.mrb[0].mxu0 %v1026
    %v1094 = vpop.f32.mrb[0].mxu0
    %v1095 = vadd.f32 0.0, %v1094
    %v1096 = vpop.f32.mrb[0].mxu0
    %v1097 = vadd.f32 0.0, %v1096
    %1098 = vdwg.mxu0
    %v1099 = vadd.f32 %v1021, %v1095
    %v1100 = vadd.f32 %v1022, %v1097
    %v1101 = vxor.u32 %v1099, 2147483648
    %v1102 = vxor.u32 %v1100, 2147483648
    %v1103 = vmul.f32 %v1101, 1.442695
    %v1104 = vpow.pop %v1103
    %v1105 = vmul.f32 %v1102, 1.442695
    %v1106 = vpow.pop %v1105
    %v1107 = vadd.f32 %v1104, 1.0
    %v1108 = vadd.f32 %v1106, 1.0
    %v1109 = vrcp.pop %v1107
    %v1110 = vmul.f32 1.0, %v1109
    %v1111 = vrcp.pop %v1108
    %v1112 = vmul.f32 1.0, %v1111
    %v1113 = vtanh.pop %v1100
    %v1114 = vmul.f32 %v1110, %v1015
    %v1115 = vmul.f32 %v1110, %v1113
    %1117 = vrot.lane.b32.xlu0 %v1115, 64
    %v1118 = vpop.permute.xlu0 %1117
    %v1120 = vadd.f32 %v1114, %v1118
    %v1121 = vtanh.pop %v1120
    %v1122 = vmul.f32 %v1112, %v1121
    %v1123 = vld [vmem:[#allocation9] sm:$0xff]
    %v1124 = vld [vmem:[#allocation9 + $0x8] sm:$0xff]
    %v1125 = vld [vmem:[#allocation9 + $0x10] sm:$0xff]
    %v1126 = vld [vmem:[#allocation9 + $0x18] sm:$0xff]
    %v1127 = vld [vmem:[#allocation9 + $0x20] sm:$0xff]
    %v1128 = vld [vmem:[#allocation9 + $0x28] sm:$0xff]
    %v1129 = vld [vmem:[#allocation9 + $0x30] sm:$0xff]
    %v1130 = vld [vmem:[#allocation9 + $0x38] sm:$0xff]
    %v1131 = vld [vmem:[%s5] sm:$0x1]
    %v1133 = vlaneseq
    %v1134 = vshrl.u32 %v1133, 7
    %v1135 = vsub.s32 0, %v1134
    %v1136 = vrot.slane %v1131, %v1135
    %1139 = vrot.lane.b32.xlu0 %v1122, 64
    %v1140 = vpop.permute.xlu0 %1139
    %v1141 = vsel %vm289, %v1140, 0
    %1143 = vmatprep.subr.mxu0 0.0
    %1144 = vmatpush1.msra.mxu0 %v1123
    %1145 = vmatprep.subr.mxu0 0.0
    %1146 = vmatpush1.msra.mxu0 %v1124
    %1147 = vmatprep.subr.mxu0 0.0
    %1148 = vmatpush1.msra.mxu0 %v1125
    %1149 = vmatprep.subr.mxu0 0.0
    %1150 = vmatpush1.msra.mxu0 %v1126
    %1151 = vmatprep.subr.mxu0 0.0
    %1152 = vmatpush1.msra.mxu0 %v1127
    %1153 = vmatprep.subr.mxu0 0.0
    %1154 = vmatpush1.msra.mxu0 %v1128
    %1155 = vmatprep.subr.mxu0 0.0
    %1156 = vmatpush1.msra.mxu0 %v1129
    %1157 = vmatprep.subr.mxu0 0.0
    %1158 = vmatpush1.msra.mxu0 %v1130
    %1159 = vmatprep.subr.mxu0 0.0
    %1160 = vmatpush1.msra.mxu0 0.0
    %1161 = vmatprep.subr.mxu0 0.0
    %1162 = vmatpush1.msra.mxu0 0.0
    %1163 = vmatprep.subr.mxu0 0.0
    %1164 = vmatpush1.msra.mxu0 0.0
    %1165 = vmatprep.subr.mxu0 0.0
    %1166 = vmatpush1.msra.mxu0 0.0
    %1167 = vmatprep.subr.mxu0 0.0
    %1168 = vmatpush1.msra.mxu0 0.0
    %1169 = vmatprep.subr.mxu0 0.0
    %1170 = vmatpush1.msra.mxu0 0.0
    %1171 = vmatprep.subr.mxu0 0.0
    %1172 = vmatpush1.msra.mxu0 0.0
    %1173 = vmatprep.subr.mxu0 0.0
    %1174 = vmatpush1.msra.mxu0 0.0
    %1175 = vmatprep.subr.mxu0 0.0
    %1176 = vmatpush1.msra.mxu0 0.0
    %1177 = vmatprep.subr.mxu0 0.0
    %1178 = vmatpush1.msra.mxu0 0.0
    %1179 = vmatprep.subr.mxu0 0.0
    %1180 = vmatpush1.msra.mxu0 0.0
    %1181 = vmatprep.subr.mxu0 0.0
    %1182 = vmatpush1.msra.mxu0 0.0
    %1183 = vmatprep.subr.mxu0 0.0
    %1184 = vmatpush1.msra.mxu0 0.0
    %1185 = vmatprep.subr.mxu0 0.0
    %1186 = vmatpush1.msra.mxu0 0.0
    %1187 = vmatprep.subr.mxu0 0.0
    %1188 = vmatpush1.msra.mxu0 0.0
    %1189 = vmatprep.subr.mxu0 0.0
    %1190 = vmatpush1.msra.mxu0 0.0
    %1191 = vmatprep.subr.mxu0 0.0
    %1192 = vmatpush1.msra.mxu0 0.0
    %1193 = vmatprep.subr.mxu0 0.0
    %1194 = vmatpush1.msra.mxu0 0.0
    %1195 = vmatprep.subr.mxu0 0.0
    %1196 = vmatpush1.msra.mxu0 0.0
    %1197 = vmatprep.subr.mxu0 0.0
    %1198 = vmatpush1.msra.mxu0 0.0
    %1199 = vmatprep.subr.mxu0 0.0
    %1200 = vmatpush1.msra.mxu0 0.0
    %1201 = vmatprep.subr.mxu0 0.0
    %1202 = vmatpush1.msra.mxu0 0.0
    %1203 = vmatprep.subr.mxu0 0.0
    %1204 = vmatpush1.msra.mxu0 0.0
    %1205 = vmatprep.subr.mxu0 0.0
    %1206 = vmatpush1.msra.mxu0 0.0
    %1207 = vmatprep.mubr.f32.mxu0 0.0
    %1208 = vmatmul.mubr.f32.gmra.mrb[0].mxu0 %v1141
    %v1209 = vpop.f32.mrb[0].mxu0
    %v1210 = vadd.f32 %v1136, %v1209
    %v1211 = vpop.f32.mrb[0].mxu0
    %1212 = vdwg.mxu0
    %1213 = vst [vmem:[#allocation11] sm:$0xff] %v1210
    // Predicated region
    $region42: #{tpu_custom_call.1} parent=1 // pred_check
      _
    $region43: #{tpu_custom_call.1} parent=1 // pred_check_branch
      %1215 = sbr.rel (0) target = $region45
    $region44: #{tpu_custom_call.1} parent=1 // pred_region
      %s1217 = ssub.s32 128, 128
      %1218 = vsyncadd [#allocation5], %s1217
      %s1220 = sshll.u32 [#allocation11], 4
      %s1221 = int_to_ptr.vmem [resolvable:$true] %s1220
      %1223 = dma.vmem_to_hbm [thread:$0]  %s1221, 128, %s6, [#allocation5]
    $region45: #{tpu_custom_call.1} parent=1 // pred_fallthru
      _
    // Predicated region
    $region46: #{tpu_custom_call.1} parent=1 // pred_check
      _
    $region47: #{tpu_custom_call.1} parent=1 // pred_check_branch
      %1225 = sbr.rel (0) target = $region49
    $region48: #{tpu_custom_call.1} parent=1 // pred_region
      %1226 = dma.done [#allocation5], 128
    $region49: #{tpu_custom_call.1} parent=1 // pred_fallthru
      _
    %1227 = vsyncpa [#allocation4], 1
    %1228 = vsyncpa [#allocation7], 1
    %1229 = vsyncpa [#allocation10], 1
    %1230 = vsyncpa [#allocation5], 1

</llo_original>
